<compile_context>
chip_gen: v7x
topology: tpu7x:2x2x1
jax: 0.10.0
libtpu: 0.0.40
codegen_flags: <defaults>
</compile_context>

<pallas_src>
import math
import functools

import numpy as np
import jax
import jax.numpy as jnp
from jax.experimental import pallas as pl
from jax.experimental.pallas import tpu as pltpu


def _vpt_kernel(mask_ref, x_ref, wp_ref, bp_ref, wm_ref, bm_ref,
                proj_ref, mt_ref, *, num_patches, patch_len):
    """One (d-tile, image) grid step.

    mask_ref: [1, Q, HW] f32      x_ref:  [1, HW, C]  (f32 or bf16)
    wp_ref:   [C, TD]             bp_ref: [1, TD] f32
    wm_ref:   [HW, TD]            bm_ref: [1, TD] f32
    proj_ref: [1, Q*N, TD] f32    mt_ref: [1, Q, TD] f32
    """
    q = mask_ref.shape[1]
    hw = mask_ref.shape[2]
    n = num_patches

    # masks = (masks > 0); denorm = sum + 1e-8; masks = masks / denorm
    # (mask math kept in f32 even on the bf16 path).
    m = mask_ref[0]                                           # [Q, HW]
    m_bin = (m > 0).astype(jnp.float32)
    denorm = jnp.sum(m_bin, axis=1, keepdims=True) + 1e-8     # [Q, 1]
    m_n = m_bin / denorm                                      # [Q, HW]

    # Patch indicator built in-register: patch ni of the 'pooling' strategy is
    # the contiguous chunk [ni*P, (ni+1)*P) of the row-major flattened (h, w)
    # grid.  Only iota + mul + compare (no integer division).
    pix = jax.lax.broadcasted_iota(jnp.int32, (n, hw), 1)     # pixel index
    pid = jax.lax.broadcasted_iota(jnp.int32, (n, hw), 0)     # patch index
    lo = pid * patch_len
    ind = ((pix >= lo) & (pix < lo + patch_len)).astype(jnp.float32)  # [N, HW]

    # Block-structured mask: row (qi*N + ni) holds the normalized mask of
    # region qi restricted to patch ni (zeros elsewhere).  The 'pooling'
    # einsum then becomes one MXU contraction against x[HW, C].
    mask_block = (m_n[:, None, :] * ind[None, :, :]).reshape(q * n, hw)

    x = x_ref[0]                                              # [HW, C]
    vpt = jnp.dot(mask_block.astype(x.dtype), x,
                  preferred_element_type=jnp.float32)         # [Q*N, C] f32

    # vpt_feats_proj (this d-tile of llm_hidden), batched over Q*N.
    proj = jnp.dot(vpt.astype(wp_ref.dtype), wp_ref[...],
                   preferred_element_type=jnp.float32) + bp_ref[...]  # [Q*N, TD]

    # legacy get_mask_token: mask.flatten(2) @ W_me.T + b_me, batched over Q.
    mt = jnp.dot(m_n.astype(wm_ref.dtype), wm_ref[...],
                 preferred_element_type=jnp.float32) + bm_ref[...]    # [Q, TD]

    proj_ref[0] = proj.astype(proj_ref.dtype)
    mt_ref[0] = mt.astype(mt_ref.dtype)


def pad_regions(regions):
    """Host-side glue mirroring VPTEncoder.pad_regions (Python loops)."""
    region_count = []
    max_h = max_w = 0
    for regs in regions:
        if regs is None:
            region_count.append(0)
            continue
        region_count.append(len(regs))
        for r in regs:
            hh, ww = r.shape
            max_h, max_w = max(max_h, hh), max(max_w, ww)
    bsz = len(regions)
    max_num = max(region_count)
    out = np.zeros((bsz, max_num, max_h, max_w), dtype=np.float32)
    for bi, num in enumerate(region_count):
        if num == 0:
            continue
        for ri, r in enumerate(regions[bi]):
            rr = np.asarray(r, dtype=np.float32)
            out[bi, ri, :rr.shape[0], :rr.shape[1]] = rr
    return jnp.asarray(out), region_count


def _round_up(v, m):
    return ((v + m - 1) // m) * m


def vpt_encoder_legacy_forward(x, masks_padded, region_count, params,
                               num_patches, *, weight_dtype=None, max_td=1024):
    """VPTEncoderLegacy.forward (strategy='pooling').

    x            : [B, L, C] image features (L = h*w, must be 24*24 for the
                   legacy mask_embedding Linear(24*24, llm_hidden)).
    masks_padded : [B, Q, mh, mw] padded region masks (from pad_regions).
    params       : wp [C, D] (vpt_feats_proj.weight.T), bp [1, D],
                   wm [L, D] (mask_embedding.weight.T), bm [1, D].
    weight_dtype : optional compute dtype for x / wp / wm (e.g. jnp.bfloat16)
                   -> halves HBM weight bytes at production sizes.
    max_td       : max llm_hidden tile width (rounded to a multiple of 128).
    """
    B, L, C = x.shape
    h = w = int(math.isqrt(L))
    assert h * w == L
    Q = masks_padded.shape[1]
    div = int(math.isqrt(num_patches))
    P = (h // div) * (w // div)          # flat pixels per pooling patch
    D = params["wp"].shape[1]
    HW = L

    # ---- glue: optional interpolation + flatten (plain JAX) ----
    masks = masks_padded.astype(jnp.float32)
    if masks.shape[-2:] != (h, w):
        # TODO(synk): jax.image.resize 'bilinear' differs slightly from
        # F.interpolate(align_corners=False); because the mask is binarized
        # with (m > 0) afterwards, boundary pixels may flip.
        masks = jax.image.resize(masks, masks.shape[:2] + (h, w),
                                 method="bilinear")
    mask_flat = masks.reshape(B, Q, HW)   # stays f32: mask math is f32

    # ---- dtypes: optionally stream x / weights as bf16 (HBM-BW lever) ----
    cdt = x.dtype if weight_dtype is None else weight_dtype
    xk = x.astype(cdt)
    wp = params["wp"].astype(cdt)
    wm = params["wm"].astype(cdt)
    bp = params["bp"].astype(jnp.float32)
    bm = params["bm"].astype(jnp.float32)

    # ---- pad D to a multiple of 128 (lane-dense stores) and pick D tile ----
    D_pad = _round_up(D, 128)
    if D_pad != D:
        wp = jnp.pad(wp, ((0, 0), (0, D_pad - D)))
        wm = jnp.pad(wm, ((0, 0), (0, D_pad - D)))
        bp = jnp.pad(bp, ((0, 0), (0, D_pad - D)))
        bm = jnp.pad(bm, ((0, 0), (0, D_pad - D)))
    td = min(D_pad, _round_up(max_td, 128))
    while D_pad % td:
        td -= 128
    n_d = D_pad // td

    kernel = functools.partial(_vpt_kernel, num_patches=num_patches,
                               patch_len=P)

    proj, mt = pl.pallas_call(
        kernel,
        out_shape=(
            jax.ShapeDtypeStruct((B, Q * num_patches, D_pad), jnp.float32),
            jax.ShapeDtypeStruct((B, Q, D_pad), jnp.float32),
        ),
        # d is the OUTER grid axis (each weight tile is fetched once and
        # reused across the batch) and the "parallel" one (v7x TensorCores
        # split the weight stream instead of duplicating it).
        grid=(n_d, B),
        in_specs=[
            pl.BlockSpec((1, Q, HW), lambda d, b: (b, 0, 0)),        # mask
            pl.BlockSpec((1, HW, C), lambda d, b: (b, 0, 0)),        # x
            pl.BlockSpec((C, td), lambda d, b: (0, d)),              # wp tile
            pl.BlockSpec((1, td), lambda d, b: (0, d)),              # bp tile
            pl.BlockSpec((HW, td), lambda d, b: (0, d)),             # wm tile
            pl.BlockSpec((1, td), lambda d, b: (0, d)),              # bm tile
        ],
        out_specs=[
            pl.BlockSpec((1, Q * num_patches, td), lambda d, b: (b, 0, d)),
            pl.BlockSpec((1, Q, td), lambda d, b: (b, 0, d)),
        ],
        compiler_params=pltpu.CompilerParams(
            dimension_semantics=("parallel", "arbitrary"),
            vmem_limit_bytes=64 * 1024 * 1024,
        ),
        # NOTE: the pooling matmul (mask_block @ x) is recomputed per d-tile;
        # at production sizes the kernel is weight-HBM bound, so that extra
        # MXU work sits in slack.
    )(mask_flat, xk, wp, bp, wm, bm)

    proj = proj[..., :D]
    mt = mt[..., :D]
    # cat([proj, mask_token], dim=2) in the wrapper (stores stay lane-dense
    # in the kernel; this concat is tiny on the XLA side).  Rows of regions
    # beyond region_count[b] are bias-only (zero mask) — downstream consumers
    # must mask by vpt_count, matching the PyTorch reference.
    vpt_feats = jnp.concatenate(
        [proj.reshape(B, Q, num_patches, D), mt[:, :, None, :]], axis=2)
    return dict(vpt_feats=vpt_feats, vpt_count=region_count)


def ref_forward(x, masks_padded, params, num_patches):
    """Pure-JAX reference mirroring the PyTorch legacy forward."""
    B, L, C = x.shape
    h = w = int(math.isqrt(L))
    Q = masks_padded.shape[1]
    div = int(math.isqrt(num_patches))
    ph, pw = h // div, w // div
    xn = jnp.transpose(x.reshape(B, h, w, C), (0, 3, 1, 2))
    m = masks_padded
    if m.shape[-2:] != (h, w):
        m = jax.image.resize(m, m.shape[:2] + (h, w), method="bilinear")
    m = (m > 0).astype(x.dtype)
    denorm = m.sum(axis=(-1, -2), keepdims=True) + 1e-8
    m = m / denorm
    xp = xn.reshape(B, C, num_patches, ph, pw)
    mp = m.reshape(B, Q, num_patches, ph, pw)
    vpt = jnp.einsum('bcnhw,bqnhw->bqnc', xp, mp)
    proj = vpt @ params["wp"] + params["bp"][0]
    mt = m.reshape(B, Q, h * w) @ params["wm"] + params["bm"][0]
    return jnp.concatenate([proj, mt[:, :, None, :]], axis=2)


if __name__ == "__main__":
    # config: visual_hidden=32, num_patches=16, strategy='pooling',
    # image feature x [B, L=24*24, C] (24x24 so the legacy
    # mask_embedding Linear(24*24, llm_hidden) is consistent).
    B, h, w, C, N = 2, 24, 24, 32, 16
    L = h * w
    key = jax.random.PRNGKey(0)
    keys = jax.random.split(key, 10)

    x = jax.random.normal(keys[0], (B, L, C), dtype=jnp.float32)

    def make_params(kw, kb, km, kmb, D):
        return dict(
            wp=(jax.random.normal(kw, (C, D)) * 0.02).astype(jnp.float32),   # vpt_feats_proj.weight.T
            bp=(jax.random.normal(kb, (1, D)) * 0.02).astype(jnp.float32),   # vpt_feats_proj.bias
            wm=(jax.random.normal(km, (L, D)) * 0.02).astype(jnp.float32),   # mask_embedding.weight.T
            bm=(jax.random.normal(kmb, (1, D)) * 0.02).astype(jnp.float32),  # mask_embedding.bias
        )

    params64 = make_params(keys[1], keys[2], keys[3], keys[4], 64)
    params256 = make_params(keys[5], keys[6], keys[7], keys[8], 256)

    # regions: list over batch of lists of 2D binary masks (24x24).
    mkeys = jax.random.split(keys[9], 5)

    def mk(kk):
        return np.asarray(jax.random.bernoulli(kk, 0.3, (h, w)), dtype=np.float32)

    regions = [[mk(mkeys[0]), mk(mkeys[1]), mk(mkeys[2])],   # batch 0: 3 regions
               [mk(mkeys[3]), mk(mkeys[4])]]                 # batch 1: 2 regions (padded)
    masks_padded, region_count = pad_regions(regions)

    # 1) toy config (llm_hidden=64 < 128): D padded to 128 for lane-dense
    #    stores, single D-tile, grid (1, B).
    out = vpt_encoder_legacy_forward(x, masks_padded, region_count,
                                     params64, num_patches=N)
    vpt_feats = jax.block_until_ready(out["vpt_feats"])
    ref = jax.block_until_ready(ref_forward(x, masks_padded, params64, N))
    assert vpt_feats.shape == (B, 3, N + 1, 64), vpt_feats.shape
    np.testing.assert_allclose(np.asarray(vpt_feats), np.asarray(ref),
                               rtol=1e-4, atol=1e-4)
    assert out["vpt_count"] == [3, 2]

    # 2) D-tiled path (llm_hidden=256, max_td=128 -> two D-tiles on the
    #    parallel grid axis, grid (2, B)).
    out2 = vpt_encoder_legacy_forward(x, masks_padded, region_count,
                                      params256, num_patches=N, max_td=128)
    vpt_feats2 = jax.block_until_ready(out2["vpt_feats"])
    ref2 = jax.block_until_ready(ref_forward(x, masks_padded, params256, N))
    assert vpt_feats2.shape == (B, 3, N + 1, 256), vpt_feats2.shape
    np.testing.assert_allclose(np.asarray(vpt_feats2), np.asarray(ref2),
                               rtol=1e-4, atol=1e-4)

    # 3) bf16 weight/activation path (production HBM-bandwidth lever);
    #    checked against the f32 reference with a relaxed tolerance.
    out3 = vpt_encoder_legacy_forward(x, masks_padded, region_count,
                                      params64, num_patches=N,
                                      weight_dtype=jnp.bfloat16)
    vpt_feats3 = jax.block_until_ready(out3["vpt_feats"])
    np.testing.assert_allclose(np.asarray(vpt_feats3), np.asarray(ref),
                               rtol=2e-2, atol=2e-3)

    print("KERNEL_OK")
</pallas_src>

<mosaic_0001>
module attributes {stable_mosaic.version = 11 : i64} {
  func.func @_vpt_kernel(%arg0: i32, %arg1: i32, %arg2: memref<1x3x576xf32, #tpu.memory_space<vmem>>, %arg3: memref<1x576x32xf32, #tpu.memory_space<vmem>>, %arg4: memref<32x128xf32, #tpu.memory_space<vmem>>, %arg5: memref<1x128xf32, #tpu.memory_space<vmem>>, %arg6: memref<576x128xf32, #tpu.memory_space<vmem>>, %arg7: memref<1x128xf32, #tpu.memory_space<vmem>>, %arg8: memref<1x48x128xf32, #tpu.memory_space<vmem>>, %arg9: memref<1x3x128xf32, #tpu.memory_space<vmem>>) attributes {dimension_semantics = [#tpu.dimension_semantics<parallel>, #tpu.dimension_semantics<arbitrary>], iteration_bounds = array<i64: 1, 2>, scalar_prefetch = 0 : i64, scratch_operands = 0 : i64, tpu.core_type = #tpu.core_type<tc>, window_params = [{transform_indices = @transform_0, window_bounds = array<i64: 1, 3, 576>}, {transform_indices = @transform_1, window_bounds = array<i64: 1, 576, 32>}, {transform_indices = @transform_2, window_bounds = array<i64: 32, 128>}, {transform_indices = @transform_3, window_bounds = array<i64: 1, 128>}, {transform_indices = @transform_4, window_bounds = array<i64: 576, 128>}, {transform_indices = @transform_5, window_bounds = array<i64: 1, 128>}, {transform_indices = @transform_6, window_bounds = array<i64: 1, 48, 128>}, {transform_indices = @transform_7, window_bounds = array<i64: 1, 3, 128>}]} {
    %c0 = arith.constant 0 : index
    %c0_0 = arith.constant 0 : index
    %c0_1 = arith.constant 0 : index
    %0 = vector.load %arg2[%c0, %c0_0, %c0_1] : memref<1x3x576xf32, #tpu.memory_space<vmem>>, vector<1x3x576xf32>
    %1 = vector.shape_cast %0 : vector<1x3x576xf32> to vector<3x576xf32>
    %cst = arith.constant 0.000000e+00 : f32
    %2 = vector.broadcast %cst : f32 to vector<3x576xf32>
    %3 = arith.cmpf ogt, %1, %2 : vector<3x576xf32>
    %4 = arith.extui %3 : vector<3x576xi1> to vector<3x576xi32>
    %5 = arith.sitofp %4 : vector<3x576xi32> to vector<3x576xf32>
    %cst_2 = arith.constant dense<0.000000e+00> : vector<3xf32>
    %6 = vector.multi_reduction <add>, %5, %cst_2 [1] : vector<3x576xf32> to vector<3xf32>
    %7 = vector.shape_cast %6 : vector<3xf32> to vector<3x1xf32>
    %cst_3 = arith.constant 9.99999993E-9 : f32
    %8 = vector.broadcast %cst_3 : f32 to vector<3x1xf32>
    %9 = arith.addf %7, %8 : vector<3x1xf32>
    %10 = vector.broadcast %9 : vector<3x1xf32> to vector<3x576xf32>
    %11 = arith.divf %5, %10 : vector<3x576xf32>
    %12 = tpu.iota {dimensions = array<i32: 1>} : vector<16x576xi32>
    %13 = tpu.iota {dimensions = array<i32: 0>} : vector<16x576xi32>
    %c36_i32 = arith.constant 36 : i32
    %14 = vector.broadcast %c36_i32 : i32 to vector<16x576xi32>
    %15 = arith.muli %13, %14 : vector<16x576xi32>
    %16 = arith.cmpi sge, %12, %15 : vector<16x576xi32>
    %c36_i32_4 = arith.constant 36 : i32
    %17 = vector.broadcast %c36_i32_4 : i32 to vector<16x576xi32>
    %18 = arith.addi %15, %17 : vector<16x576xi32>
    %19 = arith.cmpi slt, %12, %18 : vector<16x576xi32>
    %20 = arith.andi %16, %19 : vector<16x576xi1>
    %21 = arith.extui %20 : vector<16x576xi1> to vector<16x576xi32>
    %22 = arith.sitofp %21 : vector<16x576xi32> to vector<16x576xf32>
    %23 = vector.shape_cast %11 : vector<3x576xf32> to vector<3x1x576xf32>
    %24 = vector.shape_cast %22 : vector<16x576xf32> to vector<1x16x576xf32>
    %25 = vector.broadcast %23 : vector<3x1x576xf32> to vector<3x16x576xf32>
    %26 = vector.broadcast %24 : vector<1x16x576xf32> to vector<3x16x576xf32>
    %27 = arith.mulf %25, %26 : vector<3x16x576xf32>
    %28 = vector.shape_cast %27 : vector<3x16x576xf32> to vector<48x576xf32>
    %c0_5 = arith.constant 0 : index
    %c0_6 = arith.constant 0 : index
    %c0_7 = arith.constant 0 : index
    %29 = vector.load %arg3[%c0_5, %c0_6, %c0_7] : memref<1x576x32xf32, #tpu.memory_space<vmem>>, vector<1x576x32xf32>
    %30 = vector.shape_cast %29 : vector<1x576x32xf32> to vector<576x32xf32>
    %cst_8 = arith.constant dense<0.000000e+00> : vector<48x32xf32>
    %31 = tpu.matmul %28, %30, %cst_8 {dimension_numbers = #tpu.dot_dimension_numbers<[1], [0], [0], [1], [0, 0, 1, 1], [], []>} : vector<48x576xf32>, vector<576x32xf32>, vector<48x32xf32> -> vector<48x32xf32>
    %c0_9 = arith.constant 0 : index
    %c0_10 = arith.constant 0 : index
    %32 = vector.load %arg4[%c0_9, %c0_10] : memref<32x128xf32, #tpu.memory_space<vmem>>, vector<32x128xf32>
    %cst_11 = arith.constant dense<0.000000e+00> : vector<48x128xf32>
    %33 = tpu.matmul %31, %32, %cst_11 {dimension_numbers = #tpu.dot_dimension_numbers<[1], [0], [0], [1], [0, 0, 1, 1], [], []>} : vector<48x32xf32>, vector<32x128xf32>, vector<48x128xf32> -> vector<48x128xf32>
    %c0_12 = arith.constant 0 : index
    %c0_13 = arith.constant 0 : index
    %34 = vector.load %arg5[%c0_12, %c0_13] : memref<1x128xf32, #tpu.memory_space<vmem>>, vector<1x128xf32>
    %35 = vector.broadcast %34 : vector<1x128xf32> to vector<48x128xf32>
    %36 = arith.addf %33, %35 : vector<48x128xf32>
    %c0_14 = arith.constant 0 : index
    %c0_15 = arith.constant 0 : index
    %37 = vector.load %arg6[%c0_14, %c0_15] : memref<576x128xf32, #tpu.memory_space<vmem>>, vector<576x128xf32>
    %cst_16 = arith.constant dense<0.000000e+00> : vector<3x128xf32>
    %38 = tpu.matmul %11, %37, %cst_16 {dimension_numbers = #tpu.dot_dimension_numbers<[1], [0], [0], [1], [0, 0, 1, 1], [], []>} : vector<3x576xf32>, vector<576x128xf32>, vector<3x128xf32> -> vector<3x128xf32>
    %c0_17 = arith.constant 0 : index
    %c0_18 = arith.constant 0 : index
    %39 = vector.load %arg7[%c0_17, %c0_18] : memref<1x128xf32, #tpu.memory_space<vmem>>, vector<1x128xf32>
    %40 = vector.broadcast %39 : vector<1x128xf32> to vector<3x128xf32>
    %41 = arith.addf %38, %40 : vector<3x128xf32>
    %c0_19 = arith.constant 0 : index
    %c0_20 = arith.constant 0 : index
    %c0_21 = arith.constant 0 : index
    %42 = vector.load %arg8[%c0_19, %c0_20, %c0_21] : memref<1x48x128xf32, #tpu.memory_space<vmem>>, vector<1x48x128xf32>
    %43 = vector.shape_cast %42 : vector<1x48x128xf32> to vector<48x128xf32>
    %44 = vector.shape_cast %36 : vector<48x128xf32> to vector<1x48x128xf32>
    tpu.vector_store %arg8[%c0_19, %c0_20, %c0_21], %44 {strides = array<i32>} : memref<1x48x128xf32, #tpu.memory_space<vmem>>, vector<1x48x128xf32>,
    %c0_22 = arith.constant 0 : index
    %c0_23 = arith.constant 0 : index
    %c0_24 = arith.constant 0 : index
    %45 = vector.load %arg9[%c0_22, %c0_23, %c0_24] : memref<1x3x128xf32, #tpu.memory_space<vmem>>, vector<1x3x128xf32>
    %46 = vector.shape_cast %45 : vector<1x3x128xf32> to vector<3x128xf32>
    %47 = vector.shape_cast %41 : vector<3x128xf32> to vector<1x3x128xf32>
    tpu.vector_store %arg9[%c0_22, %c0_23, %c0_24], %47 {strides = array<i32>} : memref<1x3x128xf32, #tpu.memory_space<vmem>>, vector<1x3x128xf32>,
    return
  }
  func.func @transform_0(%arg0: i32, %arg1: i32) -> (i32, i32, i32) {
    %c0_i32 = arith.constant 0 : i32
    %c0_i32_0 = arith.constant 0 : i32
    %c0_i32_1 = arith.constant 0 : i32
    return %arg1, %c0_i32, %c0_i32_0 : i32, i32, i32
  }
  func.func @transform_1(%arg0: i32, %arg1: i32) -> (i32, i32, i32) {
    %c0_i32 = arith.constant 0 : i32
    %c0_i32_0 = arith.constant 0 : i32
    %c0_i32_1 = arith.constant 0 : i32
    return %arg1, %c0_i32, %c0_i32_0 : i32, i32, i32
  }
  func.func @transform_2(%arg0: i32, %arg1: i32) -> (i32, i32) {
    %c0_i32 = arith.constant 0 : i32
    %c0_i32_0 = arith.constant 0 : i32
    return %c0_i32, %arg0 : i32, i32
  }
  func.func @transform_3(%arg0: i32, %arg1: i32) -> (i32, i32) {
    %c0_i32 = arith.constant 0 : i32
    %c0_i32_0 = arith.constant 0 : i32
    return %c0_i32, %arg0 : i32, i32
  }
  func.func @transform_4(%arg0: i32, %arg1: i32) -> (i32, i32) {
    %c0_i32 = arith.constant 0 : i32
    %c0_i32_0 = arith.constant 0 : i32
    return %c0_i32, %arg0 : i32, i32
  }
  func.func @transform_5(%arg0: i32, %arg1: i32) -> (i32, i32) {
    %c0_i32 = arith.constant 0 : i32
    %c0_i32_0 = arith.constant 0 : i32
    return %c0_i32, %arg0 : i32, i32
  }
  func.func @transform_6(%arg0: i32, %arg1: i32) -> (i32, i32, i32) {
    %c0_i32 = arith.constant 0 : i32
    %c0_i32_0 = arith.constant 0 : i32
    return %arg1, %c0_i32, %arg0 : i32, i32, i32
  }
  func.func @transform_7(%arg0: i32, %arg1: i32) -> (i32, i32, i32) {
    %c0_i32 = arith.constant 0 : i32
    %c0_i32_0 = arith.constant 0 : i32
    return %arg1, %c0_i32, %arg0 : i32, i32, i32
  }
}

</mosaic_0001>

<llo_original>
// kernel: tpu_custom_call.1
$region0: #{tpu_custom_call.1}
  #allocation0 [shape = 'u32[]', space=smem, size = 0x4, offset = 0x4, fixed_abs, tag = 'smem constant byte address 0x4 - core index']
  #allocation1 [shape = 'u32[144,128]{1,0:T(1,128)}', space=vmem, size = 0x12000, scoped, tag = 'internal scratch']
  %s0 = inlined_call_operand.hbm [shape: f32[2,3,576], index: 0, kind: input, shape index: {}]
  %s1 = inlined_call_operand.hbm [shape: f32[2,576,32], index: 1, kind: input, shape index: {}]
  %s2 = inlined_call_operand.hbm [shape: f32[32,128], index: 2, kind: input, shape index: {}]
  %s3 = inlined_call_operand.hbm [shape: f32[1,128], index: 3, kind: input, shape index: {}]
  %s4 = inlined_call_operand.hbm [shape: f32[576,128], index: 4, kind: input, shape index: {}]
  %s5 = inlined_call_operand.hbm [shape: f32[1,128], index: 5, kind: input, shape index: {}]
  %s6 = inlined_call_operand.hbm [shape: f32[2,48,128], index: 6, kind: output, shape index: {0}]
  %s7 = inlined_call_operand.hbm [shape: f32[2,3,128], index: 7, kind: output, shape index: {1}]
  %8 = xla_tuple %s6, %s7
  %s9 = sld [smem:[#allocation0]]
  $region89: #{tpu_custom_call.1} parent=0
    _
  %s11 = ssub.s32 1, %s9
  %s12 = scalar_select 0, %s11, %s9
  $region1: #{tpu_custom_call.1} parent=0
    #allocation2 [shape = 'u8[20480]{0}', space=vmem, size = 0x5000, scoped, tag = 'input window, operand 0']
    #allocation3 [shape = 's32[2]{0}', space=sflag, size = 0x8, scoped, tag = 'scoped memory for tpu_custom_call.1']
    #allocation4 [shape = 's32[2]{0}', space=sflag, size = 0x8, scoped, tag = 'scoped memory for tpu_custom_call.1']
    #allocation5 [shape = 'u8[589824]{0}', space=vmem, size = 0x90000, scoped, tag = 'input window, operand 1']
    #allocation6 [shape = 's32[2]{0}', space=sflag, size = 0x8, scoped, tag = 'scoped memory for tpu_custom_call.1']
    #allocation7 [shape = 'u8[16384]{0}', space=vmem, size = 0x4000, scoped, tag = 'input window, operand 2, single buffered']
    #allocation8 [shape = 'u8[512]{0}', space=vmem, size = 0x400, scoped, tag = 'input window, operand 3, single buffered']
    #allocation9 [shape = 's32[1]{0}', space=sflag, size = 0x4, scoped, tag = 'scoped memory for tpu_custom_call.1']
    #allocation10 [shape = 'u8[294912]{0}', space=vmem, size = 0x48000, scoped, tag = 'input window, operand 4, single buffered']
    #allocation11 [shape = 'u8[512]{0}', space=vmem, size = 0x400, scoped, tag = 'input window, operand 5, single buffered']
    #allocation12 [shape = 's32[1]{0}', space=sflag, size = 0x4, scoped, tag = 'scoped memory for tpu_custom_call.1']
    #allocation13 [shape = 'u8[49152]{0}', space=vmem, size = 0xc000, scoped, tag = 'output window, operand 0']
    #allocation14 [shape = 'u8[4096]{0}', space=vmem, size = 0x1000, scoped, tag = 'output window, operand 1']
    #allocation15 [shape = 's32[2]{0}', space=sflag, size = 0x8, scoped, tag = 'scoped memory for tpu_custom_call.1']
    %13 = vsyncpa [#allocation3], 0
    %s14 = scalar_lea.sflag [#allocation3], 1
    %15 = vsyncpa %s14, 0
    %16 = vsyncpa [#allocation6], 0
    %s17 = scalar_lea.sflag [#allocation6], 1
    %18 = vsyncpa %s17, 0
    %19 = vsyncpa [#allocation9], 0
    %20 = vsyncpa [#allocation12], 0
    %21 = vsyncpa [#allocation4], 0
    %s22 = scalar_lea.sflag [#allocation4], 1
    %23 = vsyncpa %s22, 0
    %24 = vsyncpa [#allocation15], 0
    %s25 = scalar_lea.sflag [#allocation15], 1
    %26 = vsyncpa %s25, 0
    loop: start=0, step=1, limit=4
    $region2: #{tpu_custom_call.1} parent=1 // loop_pre_header
      _
    $region3: #{tpu_custom_call.1} parent=1 // loop_header
      %s28 = sphi 0, %s32
      %p29 = scmp.ge.s32.totalorder %s28, 4
      %s35 = sphi 0, %s47
      %s36 = sphi 0, %s43
      %s37 = sphi 0, %s35
      %s38 = sphi 0, %s36
      %s39 = sphi 0, %s37
      %s40 = sphi 0, %s38
      %s50 = sphi 0, %s52
      %s53 = sphi 0, %s50
      %s54 = sphi 0, %s53
      %s70 = sphi 0, %s54
      %s76 = sphi 0, %s78
      %s79 = sphi 0, %s76
      %s80 = sphi 0, %s79
      %s96 = sphi 0, %s80
      %s102 = sphi 0, %s104
      %s105 = sphi 0, %s102
      %s106 = sphi 0, %s105
      %s122 = sphi 0, %s106
      %s128 = sphi 0, %s130
      %s131 = sphi 0, %s128
      %s132 = sphi 0, %s131
      %s148 = sphi 0, %s132
      %s154 = sphi 0, %s156
      %s157 = sphi 0, %s154
      %s158 = sphi 0, %s157
      %s174 = sphi 0, %s158
      %s180 = sphi 0, %s182
      %s183 = sphi 0, %s180
      %s184 = sphi 0, %s183
      %s200 = sphi 0, %s184
      %s208 = sphi 0, %s210
      %s211 = sphi 0, %s208
      %s212 = sphi 0, %s211
      %s228 = sphi 0, %s212
      %s236 = sphi 0, %s238
      %s239 = sphi 0, %s236
      %s240 = sphi 0, %s239
      %s256 = sphi 0, %s240
    $region4: #{tpu_custom_call.1} parent=1 // loop_header_branch
      %31 = sbr.rel (%p29) target = $region8
    $region5: #{tpu_custom_call.1} parent=1 // loop_body
      %s33 = ssub.s32 %s28, 1
      %s34 = ssub.s32 %s28, 2
      %s41 = sadd.s32 1, %s36
      %p42 = scmp.ge.s32.totalorder %s41, 2
      %s43 = scalar_select %p42, 0, %s41
      %s44 = sadd.s32 1, %s35
      %s45 = scalar_select %p42, %s44, %s35
      %p46 = scmp.ge.s32.totalorder %s45, 1
      %s47 = scalar_select %p46, 0, %s45
      %s48 = ssub.s32 %s36, %s43
      %p49 = scmp.eq.s32.totalorder %s48, 0
      %s51 = sadd.s32 %s50, 1
      %s52 = scalar_select %p49, %s50, %s51
      %p55 = pneg %p49
      %p56 = scmp.eq.s32.totalorder %s28, 1
      %p57 = por %p55, %p56
      %p58 = scmp.ne.s32.totalorder %s50, %s53
      %p59 = scmp.eq.s32.totalorder %s28, 0
      %p60 = por %p58, %p59
      %p61 = scmp.ne.s32.totalorder %s50, %s53
      %p62 = scmp.eq.s32.totalorder %s33, 1
      %p63 = por %p61, %p62
      %p64 = scmp.ne.s32.totalorder %s53, %s54
      %p65 = scmp.eq.s32.totalorder %s33, 0
      %p66 = por %p64, %p65
      %p67 = scmp.ne.s32.totalorder %s53, %s54
      %p68 = scmp.eq.s32.totalorder %s34, 1
      %p69 = por %p67, %p68
      %p71 = scmp.ne.s32.totalorder %s54, %s70
      %p72 = scmp.eq.s32.totalorder %s34, 0
      %p73 = por %p71, %p72
      %s74 = ssub.s32 %s36, %s43
      %p75 = scmp.eq.s32.totalorder %s74, 0
      %s77 = sadd.s32 %s76, 1
      %s78 = scalar_select %p75, %s76, %s77
      %p81 = pneg %p75
      %p82 = scmp.eq.s32.totalorder %s28, 1
      %p83 = por %p81, %p82
      %p84 = scmp.ne.s32.totalorder %s76, %s79
      %p85 = scmp.eq.s32.totalorder %s28, 0
      %p86 = por %p84, %p85
      %p87 = scmp.ne.s32.totalorder %s76, %s79
      %p88 = scmp.eq.s32.totalorder %s33, 1
      %p89 = por %p87, %p88
      %p90 = scmp.ne.s32.totalorder %s79, %s80
      %p91 = scmp.eq.s32.totalorder %s33, 0
      %p92 = por %p90, %p91
      %p93 = scmp.ne.s32.totalorder %s79, %s80
      %p94 = scmp.eq.s32.totalorder %s34, 1
      %p95 = por %p93, %p94
      %p97 = scmp.ne.s32.totalorder %s80, %s96
      %p98 = scmp.eq.s32.totalorder %s34, 0
      %p99 = por %p97, %p98
      %s100 = ssub.s32 %s35, %s47
      %p101 = scmp.eq.s32.totalorder %s100, 0
      %s103 = sadd.s32 %s102, 1
      %s104 = scalar_select %p101, %s102, %s103
      %p107 = pneg %p101
      %p108 = scmp.eq.s32.totalorder %s28, 1
      %p109 = por %p107, %p108
      %p110 = scmp.ne.s32.totalorder %s102, %s105
      %p111 = scmp.eq.s32.totalorder %s28, 0
      %p112 = por %p110, %p111
      %p113 = scmp.ne.s32.totalorder %s102, %s105
      %p114 = scmp.eq.s32.totalorder %s33, 1
      %p115 = por %p113, %p114
      %p116 = scmp.ne.s32.totalorder %s105, %s106
      %p117 = scmp.eq.s32.totalorder %s33, 0
      %p118 = por %p116, %p117
      %p119 = scmp.ne.s32.totalorder %s105, %s106
      %p120 = scmp.eq.s32.totalorder %s34, 1
      %p121 = por %p119, %p120
      %p123 = scmp.ne.s32.totalorder %s106, %s122
      %p124 = scmp.eq.s32.totalorder %s34, 0
      %p125 = por %p123, %p124
      %s126 = ssub.s32 %s35, %s47
      %p127 = scmp.eq.s32.totalorder %s126, 0
      %s129 = sadd.s32 %s128, 1
      %s130 = scalar_select %p127, %s128, %s129
      %p133 = pneg %p127
      %p134 = scmp.eq.s32.totalorder %s28, 1
      %p135 = por %p133, %p134
      %p136 = scmp.ne.s32.totalorder %s128, %s131
      %p137 = scmp.eq.s32.totalorder %s28, 0
      %p138 = por %p136, %p137
      %p139 = scmp.ne.s32.totalorder %s128, %s131
      %p140 = scmp.eq.s32.totalorder %s33, 1
      %p141 = por %p139, %p140
      %p142 = scmp.ne.s32.totalorder %s131, %s132
      %p143 = scmp.eq.s32.totalorder %s33, 0
      %p144 = por %p142, %p143
      %p145 = scmp.ne.s32.totalorder %s131, %s132
      %p146 = scmp.eq.s32.totalorder %s34, 1
      %p147 = por %p145, %p146
      %p149 = scmp.ne.s32.totalorder %s132, %s148
      %p150 = scmp.eq.s32.totalorder %s34, 0
      %p151 = por %p149, %p150
      %s152 = ssub.s32 %s35, %s47
      %p153 = scmp.eq.s32.totalorder %s152, 0
      %s155 = sadd.s32 %s154, 1
      %s156 = scalar_select %p153, %s154, %s155
      %p159 = pneg %p153
      %p160 = scmp.eq.s32.totalorder %s28, 1
      %p161 = por %p159, %p160
      %p162 = scmp.ne.s32.totalorder %s154, %s157
      %p163 = scmp.eq.s32.totalorder %s28, 0
      %p164 = por %p162, %p163
      %p165 = scmp.ne.s32.totalorder %s154, %s157
      %p166 = scmp.eq.s32.totalorder %s33, 1
      %p167 = por %p165, %p166
      %p168 = scmp.ne.s32.totalorder %s157, %s158
      %p169 = scmp.eq.s32.totalorder %s33, 0
      %p170 = por %p168, %p169
      %p171 = scmp.ne.s32.totalorder %s157, %s158
      %p172 = scmp.eq.s32.totalorder %s34, 1
      %p173 = por %p171, %p172
      %p175 = scmp.ne.s32.totalorder %s158, %s174
      %p176 = scmp.eq.s32.totalorder %s34, 0
      %p177 = por %p175, %p176
      %s178 = ssub.s32 %s35, %s47
      %p179 = scmp.eq.s32.totalorder %s178, 0
      %s181 = sadd.s32 %s180, 1
      %s182 = scalar_select %p179, %s180, %s181
      %p185 = pneg %p179
      %p186 = scmp.eq.s32.totalorder %s28, 1
      %p187 = por %p185, %p186
      %p188 = scmp.ne.s32.totalorder %s180, %s183
      %p189 = scmp.eq.s32.totalorder %s28, 0
      %p190 = por %p188, %p189
      %p191 = scmp.ne.s32.totalorder %s180, %s183
      %p192 = scmp.eq.s32.totalorder %s33, 1
      %p193 = por %p191, %p192
      %p194 = scmp.ne.s32.totalorder %s183, %s184
      %p195 = scmp.eq.s32.totalorder %s33, 0
      %p196 = por %p194, %p195
      %p197 = scmp.ne.s32.totalorder %s183, %s184
      %p198 = scmp.eq.s32.totalorder %s34, 1
      %p199 = por %p197, %p198
      %p201 = scmp.ne.s32.totalorder %s184, %s200
      %p202 = scmp.eq.s32.totalorder %s34, 0
      %p203 = por %p201, %p202
      %s204 = ssub.s32 %s36, %s43
      %s205 = ssub.s32 %s35, %s47
      %s206 = sor.u32 %s204, %s205
      %p207 = scmp.eq.s32.totalorder %s206, 0
      %s209 = sadd.s32 %s208, 1
      %s210 = scalar_select %p207, %s208, %s209
      %p213 = pneg %p207
      %p214 = scmp.eq.s32.totalorder %s28, 1
      %p215 = por %p213, %p214
      %p216 = scmp.ne.s32.totalorder %s208, %s211
      %p217 = scmp.eq.s32.totalorder %s28, 0
      %p218 = por %p216, %p217
      %p219 = scmp.ne.s32.totalorder %s208, %s211
      %p220 = scmp.eq.s32.totalorder %s33, 1
      %p221 = por %p219, %p220
      %p222 = scmp.ne.s32.totalorder %s211, %s212
      %p223 = scmp.eq.s32.totalorder %s33, 0
      %p224 = por %p222, %p223
      %p225 = scmp.ne.s32.totalorder %s211, %s212
      %p226 = scmp.eq.s32.totalorder %s34, 1
      %p227 = por %p225, %p226
      %p229 = scmp.ne.s32.totalorder %s212, %s228
      %p230 = scmp.eq.s32.totalorder %s34, 0
      %p231 = por %p229, %p230
      %s232 = ssub.s32 %s36, %s43
      %s233 = ssub.s32 %s35, %s47
      %s234 = sor.u32 %s232, %s233
      %p235 = scmp.eq.s32.totalorder %s234, 0
      %s237 = sadd.s32 %s236, 1
      %s238 = scalar_select %p235, %s236, %s237
      %p241 = pneg %p235
      %p242 = scmp.eq.s32.totalorder %s28, 1
      %p243 = por %p241, %p242
      %p244 = scmp.ne.s32.totalorder %s236, %s239
      %p245 = scmp.eq.s32.totalorder %s28, 0
      %p246 = por %p244, %p245
      %p247 = scmp.ne.s32.totalorder %s236, %s239
      %p248 = scmp.eq.s32.totalorder %s33, 1
      %p249 = por %p247, %p248
      %p250 = scmp.ne.s32.totalorder %s239, %s240
      %p251 = scmp.eq.s32.totalorder %s33, 0
      %p252 = por %p250, %p251
      %p253 = scmp.ne.s32.totalorder %s239, %s240
      %p254 = scmp.eq.s32.totalorder %s34, 1
      %p255 = por %p253, %p254
      %p257 = scmp.ne.s32.totalorder %s240, %s256
      %p258 = scmp.eq.s32.totalorder %s34, 0
      %p259 = por %p257, %p258
      %p260 = scmp.le.s32.totalorder 1, %s28
      %p261 = scmp.lt.s32.totalorder %s28, 3
      %p262 = pnand %p260, %p261
      %p263 = pneg %p262
      // Predicated region
      $region9: #{tpu_custom_call.1} parent=5 // pred_check
        _
      $region10: #{tpu_custom_call.1} parent=5 // pred_check_branch
        %265 = sbr.rel (%p262) target = $region12
      $region11: #{tpu_custom_call.1} parent=5 // pred_region
        %s266 = ssub.s32 %s28, 1
        // Predicated region
        $region13: #{tpu_custom_call.1} parent=11 // pred_check
          %p267 = pneg %p118
        $region14: #{tpu_custom_call.1} parent=11 // pred_check_branch
          %269 = sbr.rel (%p267) target = $region16
        $region15: #{tpu_custom_call.1} parent=11 // pred_region
          %s271 = ssub.s32 512, 512
          %272 = vsyncadd [#allocation6], %s271
          %s273 = smul.addr %s37, 128
          %s274 = scalar_lea.hbm %s2, %s273
          %s275 = sshll.u32 [#allocation7], 4
          %s276 = int_to_ptr.vmem [resolvable:$true] %s275
          %281 = dma.hbm_to_vmem [thread:$0]  %s274, 512, %s276, [#allocation6], 128, 128, 8
        $region16: #{tpu_custom_call.1} parent=11 // pred_fallthru
          _
        // Predicated region
        $region17: #{tpu_custom_call.1} parent=11 // pred_check
          %p282 = pneg %p144
        $region18: #{tpu_custom_call.1} parent=11 // pred_check_branch
          %284 = sbr.rel (%p282) target = $region20
        $region19: #{tpu_custom_call.1} parent=11 // pred_region
          %s286 = ssub.s32 16, 16
          %287 = vsyncadd [#allocation9], %s286
          %s288 = smul.addr %s37, 16
          %s289 = scalar_lea.hbm %s3, %s288
          %s291 = sshll.u32 [#allocation8], 4
          %s292 = int_to_ptr.vmem [resolvable:$true] %s291
          %294 = dma.hbm_to_vmem [thread:$0]  %s289, 16, %s292, [#allocation9]
        $region20: #{tpu_custom_call.1} parent=11 // pred_fallthru
          _
        // Predicated region
        $region21: #{tpu_custom_call.1} parent=11 // pred_check
          %p295 = pneg %p170
        $region22: #{tpu_custom_call.1} parent=11 // pred_check_branch
          %297 = sbr.rel (%p295) target = $region24
        $region23: #{tpu_custom_call.1} parent=11 // pred_region
          %s299 = ssub.s32 9216, 9216
          %300 = vsyncadd [#allocation9], %s299
          %s301 = smul.addr %s37, 128
          %s302 = scalar_lea.hbm %s4, %s301
          %s303 = sshll.u32 [#allocation10], 4
          %s304 = int_to_ptr.vmem [resolvable:$true] %s303
          %309 = dma.hbm_to_vmem [thread:$0]  %s302, 9216, %s304, [#allocation9], 128, 128, 8
        $region24: #{tpu_custom_call.1} parent=11 // pred_fallthru
          _
        // Predicated region
        $region25: #{tpu_custom_call.1} parent=11 // pred_check
          %p310 = pneg %p196
        $region26: #{tpu_custom_call.1} parent=11 // pred_check_branch
          %312 = sbr.rel (%p310) target = $region28
        $region27: #{tpu_custom_call.1} parent=11 // pred_region
          %s314 = ssub.s32 16, 16
          %315 = vsyncadd [#allocation12], %s314
          %s316 = smul.addr %s37, 16
          %s317 = scalar_lea.hbm %s5, %s316
          %s319 = sshll.u32 [#allocation11], 4
          %s320 = int_to_ptr.vmem [resolvable:$true] %s319
          %322 = dma.hbm_to_vmem [thread:$0]  %s317, 16, %s320, [#allocation12]
        $region28: #{tpu_custom_call.1} parent=11 // pred_fallthru
          _
      $region12: #{tpu_custom_call.1} parent=5 // pred_fallthru
        _
      %p323 = scmp.lt.s32.totalorder %s28, 2
      // Predicated region
      $region29: #{tpu_custom_call.1} parent=5 // pred_check
        %p324 = pneg %p323
      $region30: #{tpu_custom_call.1} parent=5 // pred_check_branch
        %326 = sbr.rel (%p324) target = $region32
      $region31: #{tpu_custom_call.1} parent=5 // pred_region
        // Predicated region
        $region33: #{tpu_custom_call.1} parent=31 // pred_check
          %p327 = pneg %p60
        $region34: #{tpu_custom_call.1} parent=31 // pred_check_branch
          %329 = sbr.rel (%p327) target = $region36
        $region35: #{tpu_custom_call.1} parent=31 // pred_region
          %s330 = sand.u32 %s50, 1
          %s331 = scalar_lea.sflag [#allocation3], %s330
          %s332 = sand.u32 %s50, 1
          %s333 = smul.addr %s332, 20
          %s334 = scalar_lea.vmem [#allocation2], %s333
          %s336 = ssub.s32 320, 320
          %337 = vsyncadd %s331, %s336
          %s338 = smul.addr %s36, 5
          %s339 = smul.addr %s338, 64
          %s340 = scalar_lea.hbm %s0, %s339
          %s342 = sshll.u32 %s334, 4
          %s343 = int_to_ptr.vmem [resolvable:$true] %s342
          %345 = dma.hbm_to_vmem [thread:$0]  %s340, 320, %s343, %s331
        $region36: #{tpu_custom_call.1} parent=31 // pred_fallthru
          _
        // Predicated region
        $region37: #{tpu_custom_call.1} parent=31 // pred_check
          %p346 = pneg %p86
        $region38: #{tpu_custom_call.1} parent=31 // pred_check_branch
          %348 = sbr.rel (%p346) target = $region40
        $region39: #{tpu_custom_call.1} parent=31 // pred_region
          %s349 = sand.u32 %s28, 1
          %s350 = scalar_lea.sflag [#allocation6], %s349
          %s351 = sand.u32 %s76, 1
          %s352 = smul.addr %s351, 576
          %s353 = scalar_lea.vmem [#allocation5], %s352
          %s355 = ssub.s32 9216, 9216
          %356 = vsyncadd %s350, %s355
          %s357 = smul.addr %s36, 72
          %s358 = smul.addr %s357, 128
          %s359 = scalar_lea.hbm %s1, %s358
          %s360 = sshll.u32 %s353, 4
          %s361 = int_to_ptr.vmem [resolvable:$true] %s360
          %366 = dma.hbm_to_vmem [thread:$0]  %s359, 9216, %s361, %s350, 128, 128, 8
        $region40: #{tpu_custom_call.1} parent=31 // pred_fallthru
          _
      $region32: #{tpu_custom_call.1} parent=5 // pred_fallthru
        _
      %p367 = scmp.le.s32.totalorder 1, %s28
      %p368 = scmp.lt.s32.totalorder %s28, 3
      %p369 = pnand %p367, %p368
      %p370 = pneg %p369
      // Predicated region
      $region41: #{tpu_custom_call.1} parent=5 // pred_check
        _
      $region42: #{tpu_custom_call.1} parent=5 // pred_check_branch
        %372 = sbr.rel (%p369) target = $region44
      $region43: #{tpu_custom_call.1} parent=5 // pred_region
        %s373 = ssub.s32 %s28, 1
        %s374 = sand.u32 %s53, 1
        %s375 = scalar_lea.sflag [#allocation3], %s374
        %s376 = sand.u32 %s53, 1
        %s377 = smul.addr %s376, 20
        %s378 = scalar_lea.vmem [#allocation2], %s377
        // Predicated region
        $region45: #{tpu_custom_call.1} parent=43 // pred_check
          %p379 = pneg %p66
        $region46: #{tpu_custom_call.1} parent=43 // pred_check_branch
          %381 = sbr.rel (%p379) target = $region48
        $region47: #{tpu_custom_call.1} parent=43 // pred_region
          %382 = dma.done %s375, 320
        $region48: #{tpu_custom_call.1} parent=43 // pred_fallthru
          _
        %s383 = sand.u32 %s33, 1
        %s384 = scalar_lea.sflag [#allocation6], %s383
        %s385 = sand.u32 %s79, 1
        %s386 = smul.addr %s385, 576
        %s387 = scalar_lea.vmem [#allocation5], %s386
        // Predicated region
        $region49: #{tpu_custom_call.1} parent=43 // pred_check
          %p388 = pneg %p92
        $region50: #{tpu_custom_call.1} parent=43 // pred_check_branch
          %390 = sbr.rel (%p388) target = $region52
        $region51: #{tpu_custom_call.1} parent=43 // pred_region
          %391 = dma.done %s384, 9216
        $region52: #{tpu_custom_call.1} parent=43 // pred_fallthru
          _
        // Predicated region
        $region53: #{tpu_custom_call.1} parent=43 // pred_check
          %p392 = pneg %p118
        $region54: #{tpu_custom_call.1} parent=43 // pred_check_branch
          %394 = sbr.rel (%p392) target = $region56
        $region55: #{tpu_custom_call.1} parent=43 // pred_region
          %395 = dma.done [#allocation6], 512
        $region56: #{tpu_custom_call.1} parent=43 // pred_fallthru
          _
        // Predicated region
        $region57: #{tpu_custom_call.1} parent=43 // pred_check
          %p396 = pneg %p144
        $region58: #{tpu_custom_call.1} parent=43 // pred_check_branch
          %398 = sbr.rel (%p396) target = $region60
        $region59: #{tpu_custom_call.1} parent=43 // pred_region
          %399 = dma.done [#allocation9], 16
        $region60: #{tpu_custom_call.1} parent=43 // pred_fallthru
          _
        // Predicated region
        $region61: #{tpu_custom_call.1} parent=43 // pred_check
          %p400 = pneg %p170
        $region62: #{tpu_custom_call.1} parent=43 // pred_check_branch
          %402 = sbr.rel (%p400) target = $region64
        $region63: #{tpu_custom_call.1} parent=43 // pred_region
          %403 = dma.done [#allocation9], 9216
        $region64: #{tpu_custom_call.1} parent=43 // pred_fallthru
          _
        // Predicated region
        $region65: #{tpu_custom_call.1} parent=43 // pred_check
          %p404 = pneg %p196
        $region66: #{tpu_custom_call.1} parent=43 // pred_check_branch
          %406 = sbr.rel (%p404) target = $region68
        $region67: #{tpu_custom_call.1} parent=43 // pred_region
          %407 = dma.done [#allocation12], 16
        $region68: #{tpu_custom_call.1} parent=43 // pred_fallthru
          _
        %s408 = sand.u32 %s53, 1
        %s409 = scalar_lea.sflag [#allocation3], %s408
        %s410 = sand.u32 %s53, 1
        %s411 = smul.addr %s410, 20
        %s412 = scalar_lea.vmem [#allocation2], %s411
        %p413 = pneg %p66
        %p414 = pneg %p63
        %s415 = sand.u32 %s33, 1
        %s416 = scalar_lea.sflag [#allocation6], %s415
        %s417 = sand.u32 %s79, 1
        %s418 = smul.addr %s417, 576
        %s419 = scalar_lea.vmem [#allocation5], %s418
        %p420 = pneg %p92
        %p421 = pneg %p89
        %p422 = pneg %p118
        %p423 = pneg %p115
        %p424 = pneg %p144
        %p425 = pneg %p141
        %p426 = pneg %p170
        %p427 = pneg %p167
        %p428 = pneg %p196
        %p429 = pneg %p193
        %p430 = pneg %p224
        %p431 = pneg %p221
        %s432 = sand.u32 %s211, 1
        %s433 = scalar_lea.sflag [#allocation4], %s432
        %s434 = sand.u32 %s211, 1
        %s435 = smul.addr %s434, 48
        %s436 = scalar_lea.vmem [#allocation13], %s435
        %p437 = pneg %p252
        %p438 = pneg %p249
        %s439 = sand.u32 %s239, 1
        %s440 = scalar_lea.sflag [#allocation15], %s439
        %s441 = sand.u32 %s239, 1
        %s442 = smul.addr %s441, 4
        %s443 = scalar_lea.vmem [#allocation14], %s442
        %v444 = vld [vmem:[%s378] sm:$0x77]
        %v445 = vld [vmem:[%s378 + $0x8] sm:$0x77]
        %v446 = vld [vmem:[%s378 + $0x10] sm:$0x7]
        %vm447 = vcmp.gt.f32.partialorder %v444, 0.0
        %vm448 = vcmp.gt.f32.partialorder %v445, 0.0
        %vm449 = vcmp.gt.f32.partialorder %v446, 0.0
        %v450 = vsel %vm447, 1, 0
        %v451 = vsel %vm448, 1, 0
        %v452 = vsel %vm449, 1, 0
        %v453 = vcvt.s32.f32 %v450
        %v454 = vcvt.s32.f32 %v451
        %v455 = vcvt.s32.f32 %v452
        %v458 = vcombine.high %v453, %v453
        %v459 = vcombine.high %v454, %v454
        %vm462 = vcmask 1042432
        %v463 = vsel %vm462, %v453, 0.0
        %v464 = vsel %vm462, %v458, 0.0
        %v465 = vadd.f32 %v463, %v464
        %v466 = vsel %vm462, %v454, 0.0
        %v467 = vadd.f32 %v465, %v466
        %v468 = vsel %vm462, %v459, 0.0
        %v469 = vadd.f32 %v467, %v468
        %vm470 = vcmask 518144
        %v471 = vsel %vm470, %v455, 0.0
        %v472 = vadd.f32 %v469, %v471
        %473 = vadd.xlane.f32.xlu0 %v472
        %v474 = vpop.xlane.xlu0 %473
        %v475 = vadd.f32 %v474, 1e-08
        %v478 = vunpack.c.l.s4 839922192
        %v479 = vunpack.c.0.s8 %v478
        %v480 = vlaneseq
        %v481 = vshrl.u32 %v480, 7
        %v482 = vsub.s32 %v479, %v481
        %v483 = vrot.slane %v475, %v482
        %v485 = vrcp.pop %v483
        %v486 = vmul.f32 %v453, %v485
        %v487 = vmul.f32 %v454, %v485
        %v488 = vmul.f32 %v455, %v485
        %v489 = vlaneseq
        %v490 = vand.u32 %v489, 127
        %v491 = vadd.s32 %v490, 128
        %v492 = vadd.s32 %v490, 256
        %v493 = vadd.s32 %v490, 384
        %v494 = vadd.s32 %v490, 512
        %v495 = vlaneseq
        %v496 = vshrl.u32 %v495, 7
        %v497 = vadd.s32 %v496, 8
        %v498 = vmul.u32 %v496, 36
        %v499 = vmul.u32 %v497, 36
        %vm500 = vcmp.ge.s32.totalorder %v490, %v498
        %vm501 = vcmp.ge.s32.totalorder %v491, %v498
        %vm502 = vcmp.ge.s32.totalorder %v492, %v498
        %vm503 = vcmp.ge.s32.totalorder %v493, %v498
        %vm504 = vcmp.ge.s32.totalorder %v494, %v498
        %vm505 = vcmp.ge.s32.totalorder %v490, %v499
        %vm506 = vcmp.ge.s32.totalorder %v491, %v499
        %vm507 = vcmp.ge.s32.totalorder %v492, %v499
        %vm508 = vcmp.ge.s32.totalorder %v493, %v499
        %vm509 = vcmp.ge.s32.totalorder %v494, %v499
        %v510 = vadd.s32 %v498, 36
        %v511 = vadd.s32 %v499, 36
        %vm512 = vcmp.lt.s32.totalorder %v490, %v510
        %vm513 = vcmp.lt.s32.totalorder %v491, %v510
        %vm514 = vcmp.lt.s32.totalorder %v492, %v510
        %vm515 = vcmp.lt.s32.totalorder %v493, %v510
        %vm516 = vcmp.lt.s32.totalorder %v494, %v510
        %vm517 = vcmp.lt.s32.totalorder %v490, %v511
        %vm518 = vcmp.lt.s32.totalorder %v491, %v511
        %vm519 = vcmp.lt.s32.totalorder %v492, %v511
        %vm520 = vcmp.lt.s32.totalorder %v493, %v511
        %vm521 = vcmp.lt.s32.totalorder %v494, %v511
        %vm522 = vmand %vm500, %vm512
        %vm523 = vmand %vm501, %vm513
        %vm524 = vmand %vm502, %vm514
        %vm525 = vmand %vm503, %vm515
        %vm526 = vmand %vm504, %vm516
        %vm527 = vmand %vm505, %vm517
        %vm528 = vmand %vm506, %vm518
        %vm529 = vmand %vm507, %vm519
        %vm530 = vmand %vm508, %vm520
        %vm531 = vmand %vm509, %vm521
        %v532 = vsel %vm522, 1, 0
        %v533 = vsel %vm523, 1, 0
        %v534 = vsel %vm524, 1, 0
        %v535 = vsel %vm525, 1, 0
        %v536 = vsel %vm526, 1, 0
        %v537 = vsel %vm527, 1, 0
        %v538 = vsel %vm528, 1, 0
        %v539 = vsel %vm529, 1, 0
        %v540 = vsel %vm530, 1, 0
        %v541 = vsel %vm531, 1, 0
        %v542 = vcvt.s32.f32 %v532
        %v543 = vcvt.s32.f32 %v533
        %v544 = vcvt.s32.f32 %v534
        %v545 = vcvt.s32.f32 %v535
        %v546 = vcvt.s32.f32 %v536
        %v547 = vcvt.s32.f32 %v537
        %v548 = vcvt.s32.f32 %v538
        %v549 = vcvt.s32.f32 %v539
        %v550 = vcvt.s32.f32 %v540
        %v551 = vcvt.s32.f32 %v541
        %v556 = vunpack.c.l.s4 1966171168
        %v557 = vunpack.c.0.s8 %v556
        %v558 = vlaneseq
        %v559 = vshrl.u32 %v558, 7
        %v560 = vsub.s32 %v557, %v559
        %v561 = vrot.slane %v486, %v560
        %v563 = vunpack.c.l.s4 1966171168
        %v564 = vunpack.c.0.s8 %v563
        %v565 = vlaneseq
        %v566 = vshrl.u32 %v565, 7
        %v567 = vsub.s32 %v564, %v566
        %v568 = vrot.slane %v487, %v567
        %v570 = vunpack.c.l.s4 1966171168
        %v571 = vunpack.c.0.s8 %v570
        %v572 = vlaneseq
        %v573 = vshrl.u32 %v572, 7
        %v574 = vsub.s32 %v571, %v573
        %v575 = vrot.slane %v488, %v574
        %v576 = vcombine.low %v561, %v568
        %v577 = vcombine.high %v561, %v568
        %v578 = vcombine.high %v575, %v575
        %v580 = vunpack.c.l.s4 1966171168
        %v581 = vunpack.c.0.s8 %v580
        %v582 = vlaneseq
        %v583 = vshrl.u32 %v582, 7
        %v584 = vsub.s32 %v581, %v583
        %v585 = vrot.slane %v576, %v584
        %v587 = vunpack.c.l.s4 1966171168
        %v588 = vunpack.c.0.s8 %v587
        %v589 = vlaneseq
        %v590 = vshrl.u32 %v589, 7
        %v591 = vsub.s32 %v588, %v590
        %v592 = vrot.slane %v577, %v591
        %v594 = vunpack.c.l.s4 1966171168
        %v595 = vunpack.c.0.s8 %v594
        %v596 = vlaneseq
        %v597 = vshrl.u32 %v596, 7
        %v598 = vsub.s32 %v595, %v597
        %v599 = vrot.slane %v575, %v598
        %v601 = vunpack.c.l.s4 1966171168
        %v602 = vunpack.c.0.s8 %v601
        %v603 = vlaneseq
        %v604 = vshrl.u32 %v603, 7
        %v605 = vsub.s32 %v602, %v604
        %v606 = vrot.slane %v578, %v605
        %v607 = vcombine.low %v585, %v599
        %v608 = vcombine.high %v585, %v599
        %v609 = vcombine.low %v592, %v606
        %v610 = vlaneseq
        %v611 = vshrl.u32 %v610, 7
        %v612 = vsub.s32 0, %v611
        %v613 = vrot.slane %v607, %v612
        %v614 = vlaneseq
        %v615 = vshrl.u32 %v614, 7
        %v616 = vsub.s32 1, %v615
        %v617 = vrot.slane %v607, %v616
        %v618 = vlaneseq
        %v619 = vshrl.u32 %v618, 7
        %v620 = vsub.s32 2, %v619
        %v621 = vrot.slane %v607, %v620
        %v622 = vlaneseq
        %v623 = vshrl.u32 %v622, 7
        %v624 = vsub.s32 3, %v623
        %v625 = vrot.slane %v607, %v624
        %v626 = vlaneseq
        %v627 = vshrl.u32 %v626, 7
        %v628 = vsub.s32 4, %v627
        %v629 = vrot.slane %v607, %v628
        %v630 = vlaneseq
        %v631 = vshrl.u32 %v630, 7
        %v632 = vsub.s32 0, %v631
        %v633 = vrot.slane %v609, %v632
        %v634 = vlaneseq
        %v635 = vshrl.u32 %v634, 7
        %v636 = vsub.s32 1, %v635
        %v637 = vrot.slane %v609, %v636
        %v638 = vlaneseq
        %v639 = vshrl.u32 %v638, 7
        %v640 = vsub.s32 2, %v639
        %v641 = vrot.slane %v609, %v640
        %v642 = vlaneseq
        %v643 = vshrl.u32 %v642, 7
        %v644 = vsub.s32 3, %v643
        %v645 = vrot.slane %v609, %v644
        %v646 = vlaneseq
        %v647 = vshrl.u32 %v646, 7
        %v648 = vsub.s32 4, %v647
        %v649 = vrot.slane %v609, %v648
        %v650 = vlaneseq
        %v651 = vshrl.u32 %v650, 7
        %v652 = vsub.s32 0, %v651
        %v653 = vrot.slane %v608, %v652
        %v654 = vlaneseq
        %v655 = vshrl.u32 %v654, 7
        %v656 = vsub.s32 1, %v655
        %v657 = vrot.slane %v608, %v656
        %v658 = vlaneseq
        %v659 = vshrl.u32 %v658, 7
        %v660 = vsub.s32 2, %v659
        %v661 = vrot.slane %v608, %v660
        %v662 = vlaneseq
        %v663 = vshrl.u32 %v662, 7
        %v664 = vsub.s32 3, %v663
        %v665 = vrot.slane %v608, %v664
        %v666 = vlaneseq
        %v667 = vshrl.u32 %v666, 7
        %v668 = vsub.s32 4, %v667
        %v669 = vrot.slane %v608, %v668
        %v685 = vmul.f32 %v613, %v542
        %v686 = vmul.f32 %v617, %v543
        %v687 = vmul.f32 %v621, %v544
        %v688 = vmul.f32 %v625, %v545
        %v689 = vmul.f32 %v629, %v546
        %v690 = vmul.f32 %v613, %v547
        %v691 = vmul.f32 %v617, %v548
        %v692 = vmul.f32 %v621, %v549
        %v693 = vmul.f32 %v625, %v550
        %v694 = vmul.f32 %v629, %v551
        %v695 = vmul.f32 %v633, %v542
        %v696 = vmul.f32 %v637, %v543
        %v697 = vmul.f32 %v641, %v544
        %v698 = vmul.f32 %v645, %v545
        %v699 = vmul.f32 %v649, %v546
        %v700 = vmul.f32 %v633, %v547
        %v701 = vmul.f32 %v637, %v548
        %v702 = vmul.f32 %v641, %v549
        %v703 = vmul.f32 %v645, %v550
        %v704 = vmul.f32 %v649, %v551
        %v705 = vmul.f32 %v653, %v542
        %v706 = vmul.f32 %v657, %v543
        %v707 = vmul.f32 %v661, %v544
        %v708 = vmul.f32 %v665, %v545
        %v709 = vmul.f32 %v669, %v546
        %v710 = vmul.f32 %v653, %v547
        %v711 = vmul.f32 %v657, %v548
        %v712 = vmul.f32 %v661, %v549
        %v713 = vmul.f32 %v665, %v550
        %v714 = vmul.f32 %v669, %v551
        %v715 = vld [vmem:[%s387] sm:$0xff]
        %v716 = vld [vmem:[%s387 + $0x8] sm:$0xff]
        %v717 = vld [vmem:[%s387 + $0x10] sm:$0xff]
        %v718 = vld [vmem:[%s387 + $0x18] sm:$0xff]
        %v719 = vld [vmem:[%s387 + $0x20] sm:$0xff]
        %v720 = vld [vmem:[%s387 + $0x28] sm:$0xff]
        %v721 = vld [vmem:[%s387 + $0x30] sm:$0xff]
        %v722 = vld [vmem:[%s387 + $0x38] sm:$0xff]
        %v723 = vld [vmem:[%s387 + $0x40] sm:$0xff]
        %v724 = vld [vmem:[%s387 + $0x48] sm:$0xff]
        %v725 = vld [vmem:[%s387 + $0x50] sm:$0xff]
        %v726 = vld [vmem:[%s387 + $0x58] sm:$0xff]
        %v727 = vld [vmem:[%s387 + $0x60] sm:$0xff]
        %v728 = vld [vmem:[%s387 + $0x68] sm:$0xff]
        %v729 = vld [vmem:[%s387 + $0x70] sm:$0xff]
        %v730 = vld [vmem:[%s387 + $0x78] sm:$0xff]
        %v731 = vld [vmem:[%s387 + $0x80] sm:$0xff]
        %v732 = vld [vmem:[%s387 + $0x88] sm:$0xff]
        %v733 = vld [vmem:[%s387 + $0x90] sm:$0xff]
        %v734 = vld [vmem:[%s387 + $0x98] sm:$0xff]
        %v735 = vld [vmem:[%s387 + $0xa0] sm:$0xff]
        %v736 = vld [vmem:[%s387 + $0xa8] sm:$0xff]
        %v737 = vld [vmem:[%s387 + $0xb0] sm:$0xff]
        %v738 = vld [vmem:[%s387 + $0xb8] sm:$0xff]
        %v739 = vld [vmem:[%s387 + $0xc0] sm:$0xff]
        %v740 = vld [vmem:[%s387 + $0xc8] sm:$0xff]
        %v741 = vld [vmem:[%s387 + $0xd0] sm:$0xff]
        %v742 = vld [vmem:[%s387 + $0xd8] sm:$0xff]
        %v743 = vld [vmem:[%s387 + $0xe0] sm:$0xff]
        %v744 = vld [vmem:[%s387 + $0xe8] sm:$0xff]
        %v745 = vld [vmem:[%s387 + $0xf0] sm:$0xff]
        %v746 = vld [vmem:[%s387 + $0xf8] sm:$0xff]
        %v747 = vld [vmem:[%s387 + $0x100] sm:$0xff]
        %v748 = vld [vmem:[%s387 + $0x108] sm:$0xff]
        %v749 = vld [vmem:[%s387 + $0x110] sm:$0xff]
        %v750 = vld [vmem:[%s387 + $0x118] sm:$0xff]
        %v751 = vld [vmem:[%s387 + $0x120] sm:$0xff]
        %v752 = vld [vmem:[%s387 + $0x128] sm:$0xff]
        %v753 = vld [vmem:[%s387 + $0x130] sm:$0xff]
        %v754 = vld [vmem:[%s387 + $0x138] sm:$0xff]
        %v755 = vld [vmem:[%s387 + $0x140] sm:$0xff]
        %v756 = vld [vmem:[%s387 + $0x148] sm:$0xff]
        %v757 = vld [vmem:[%s387 + $0x150] sm:$0xff]
        %v758 = vld [vmem:[%s387 + $0x158] sm:$0xff]
        %v759 = vld [vmem:[%s387 + $0x160] sm:$0xff]
        %v760 = vld [vmem:[%s387 + $0x168] sm:$0xff]
        %v761 = vld [vmem:[%s387 + $0x170] sm:$0xff]
        %v762 = vld [vmem:[%s387 + $0x178] sm:$0xff]
        %v763 = vld [vmem:[%s387 + $0x180] sm:$0xff]
        %v764 = vld [vmem:[%s387 + $0x188] sm:$0xff]
        %v765 = vld [vmem:[%s387 + $0x190] sm:$0xff]
        %v766 = vld [vmem:[%s387 + $0x198] sm:$0xff]
        %v767 = vld [vmem:[%s387 + $0x1a0] sm:$0xff]
        %v768 = vld [vmem:[%s387 + $0x1a8] sm:$0xff]
        %v769 = vld [vmem:[%s387 + $0x1b0] sm:$0xff]
        %v770 = vld [vmem:[%s387 + $0x1b8] sm:$0xff]
        %v771 = vld [vmem:[%s387 + $0x1c0] sm:$0xff]
        %v772 = vld [vmem:[%s387 + $0x1c8] sm:$0xff]
        %v773 = vld [vmem:[%s387 + $0x1d0] sm:$0xff]
        %v774 = vld [vmem:[%s387 + $0x1d8] sm:$0xff]
        %v775 = vld [vmem:[%s387 + $0x1e0] sm:$0xff]
        %v776 = vld [vmem:[%s387 + $0x1e8] sm:$0xff]
        %v777 = vld [vmem:[%s387 + $0x1f0] sm:$0xff]
        %v778 = vld [vmem:[%s387 + $0x1f8] sm:$0xff]
        %v779 = vld [vmem:[%s387 + $0x200] sm:$0xff]
        %v780 = vld [vmem:[%s387 + $0x208] sm:$0xff]
        %v781 = vld [vmem:[%s387 + $0x210] sm:$0xff]
        %v782 = vld [vmem:[%s387 + $0x218] sm:$0xff]
        %v783 = vld [vmem:[%s387 + $0x220] sm:$0xff]
        %v784 = vld [vmem:[%s387 + $0x228] sm:$0xff]
        %v785 = vld [vmem:[%s387 + $0x230] sm:$0xff]
        %v786 = vld [vmem:[%s387 + $0x238] sm:$0xff]
        %vm787 = vcmask 523264
        %v789 = vsel %vm787, %v689, 0
        %v792 = vsel %vm787, %v694, 0
        %v795 = vsel %vm787, %v699, 0
        %v798 = vsel %vm787, %v704, 0
        %v801 = vsel %vm787, %v709, 0
        %v804 = vsel %vm787, %v714, 0
        %806 = vmatprep.subr.mxu0 0.0
        %807 = vmatpush1.msra.mxu0 %v715
        %808 = vmatprep.subr.mxu0 0.0
        %809 = vmatpush1.msra.mxu0 %v716
        %810 = vmatprep.subr.mxu0 0.0
        %811 = vmatpush1.msra.mxu0 %v717
        %812 = vmatprep.subr.mxu0 0.0
        %813 = vmatpush1.msra.mxu0 %v718
        %814 = vmatprep.subr.mxu0 0.0
        %815 = vmatpush1.msra.mxu0 %v719
        %816 = vmatprep.subr.mxu0 0.0
        %817 = vmatpush1.msra.mxu0 %v720
        %818 = vmatprep.subr.mxu0 0.0
        %819 = vmatpush1.msra.mxu0 %v721
        %820 = vmatprep.subr.mxu0 0.0
        %821 = vmatpush1.msra.mxu0 %v722
        %822 = vmatprep.subr.mxu0 0.0
        %823 = vmatpush1.msra.mxu0 %v723
        %824 = vmatprep.subr.mxu0 0.0
        %825 = vmatpush1.msra.mxu0 %v724
        %826 = vmatprep.subr.mxu0 0.0
        %827 = vmatpush1.msra.mxu0 %v725
        %828 = vmatprep.subr.mxu0 0.0
        %829 = vmatpush1.msra.mxu0 %v726
        %830 = vmatprep.subr.mxu0 0.0
        %831 = vmatpush1.msra.mxu0 %v727
        %832 = vmatprep.subr.mxu0 0.0
        %833 = vmatpush1.msra.mxu0 %v728
        %834 = vmatprep.subr.mxu0 0.0
        %835 = vmatpush1.msra.mxu0 %v729
        %836 = vmatprep.subr.mxu0 0.0
        %837 = vmatpush1.msra.mxu0 %v730
        %838 = vmatprep.subr.mxu0 0.0
        %839 = vmatpush1.msra.mxu0 %v731
        %840 = vmatprep.subr.mxu0 0.0
        %841 = vmatpush1.msra.mxu0 %v732
        %842 = vmatprep.subr.mxu0 0.0
        %843 = vmatpush1.msra.mxu0 %v733
        %844 = vmatprep.subr.mxu0 0.0
        %845 = vmatpush1.msra.mxu0 %v734
        %846 = vmatprep.subr.mxu0 0.0
        %847 = vmatpush1.msra.mxu0 %v735
        %848 = vmatprep.subr.mxu0 0.0
        %849 = vmatpush1.msra.mxu0 %v736
        %850 = vmatprep.subr.mxu0 0.0
        %851 = vmatpush1.msra.mxu0 %v737
        %852 = vmatprep.subr.mxu0 0.0
        %853 = vmatpush1.msra.mxu0 %v738
        %854 = vmatprep.subr.mxu0 0.0
        %855 = vmatpush1.msra.mxu0 %v739
        %856 = vmatprep.subr.mxu0 0.0
        %857 = vmatpush1.msra.mxu0 %v740
        %858 = vmatprep.subr.mxu0 0.0
        %859 = vmatpush1.msra.mxu0 %v741
        %860 = vmatprep.subr.mxu0 0.0
        %861 = vmatpush1.msra.mxu0 %v742
        %862 = vmatprep.subr.mxu0 0.0
        %863 = vmatpush1.msra.mxu0 %v743
        %864 = vmatprep.subr.mxu0 0.0
        %865 = vmatpush1.msra.mxu0 %v744
        %866 = vmatprep.subr.mxu0 0.0
        %867 = vmatpush1.msra.mxu0 %v745
        %868 = vmatprep.subr.mxu0 0.0
        %869 = vmatpush1.msra.mxu0 %v746
        %870 = vmatprep.mubr.f32.mxu0 %v686
        %871 = vmatmul.mubr.f32.gmra.mrb[0].mxu0 %v685
        %v872 = vpop.f32.mrb[0].mxu0
        %v873 = vadd.f32 0.0, %v872
        %v874 = vpop.f32.mrb[0].mxu0
        %875 = vmatprep.mubr.f32.mxu0 %v691
        %876 = vmatmul.mubr.f32.gmra.mrb[0].mxu0 %v690
        %v877 = vpop.f32.mrb[0].mxu0
        %v878 = vadd.f32 0.0, %v877
        %v879 = vpop.f32.mrb[0].mxu0
        %880 = vmatprep.mubr.f32.mxu0 %v696
        %881 = vmatmul.mubr.f32.gmra.mrb[0].mxu0 %v695
        %v882 = vpop.f32.mrb[0].mxu0
        %v883 = vadd.f32 0.0, %v882
        %v884 = vpop.f32.mrb[0].mxu0
        %885 = vmatprep.mubr.f32.mxu0 %v701
        %886 = vmatmul.mubr.f32.gmra.mrb[0].mxu0 %v700
        %v887 = vpop.f32.mrb[0].mxu0
        %v888 = vadd.f32 0.0, %v887
        %v889 = vpop.f32.mrb[0].mxu0
        %890 = vmatprep.mubr.f32.mxu0 %v706
        %891 = vmatmul.mubr.f32.gmra.mrb[0].mxu0 %v705
        %v892 = vpop.f32.mrb[0].mxu0
        %v893 = vadd.f32 0.0, %v892
        %v894 = vpop.f32.mrb[0].mxu0
        %895 = vmatprep.mubr.f32.mxu0 %v711
        %896 = vmatmul.mubr.f32.gmra.mrb[0].mxu0 %v710
        %v897 = vpop.f32.mrb[0].mxu0
        %v898 = vadd.f32 0.0, %v897
        %v899 = vpop.f32.mrb[0].mxu0
        %900 = vdwg.mxu0
        %901 = vmatprep.subr.mxu0 0.0
        %902 = vmatpush1.msra.mxu0 %v747
        %903 = vmatprep.subr.mxu0 0.0
        %904 = vmatpush1.msra.mxu0 %v748
        %905 = vmatprep.subr.mxu0 0.0
        %906 = vmatpush1.msra.mxu0 %v749
        %907 = vmatprep.subr.mxu0 0.0
        %908 = vmatpush1.msra.mxu0 %v750
        %909 = vmatprep.subr.mxu0 0.0
        %910 = vmatpush1.msra.mxu0 %v751
        %911 = vmatprep.subr.mxu0 0.0
        %912 = vmatpush1.msra.mxu0 %v752
        %913 = vmatprep.subr.mxu0 0.0
        %914 = vmatpush1.msra.mxu0 %v753
        %915 = vmatprep.subr.mxu0 0.0
        %916 = vmatpush1.msra.mxu0 %v754
        %917 = vmatprep.subr.mxu0 0.0
        %918 = vmatpush1.msra.mxu0 %v755
        %919 = vmatprep.subr.mxu0 0.0
        %920 = vmatpush1.msra.mxu0 %v756
        %921 = vmatprep.subr.mxu0 0.0
        %922 = vmatpush1.msra.mxu0 %v757
        %923 = vmatprep.subr.mxu0 0.0
        %924 = vmatpush1.msra.mxu0 %v758
        %925 = vmatprep.subr.mxu0 0.0
        %926 = vmatpush1.msra.mxu0 %v759
        %927 = vmatprep.subr.mxu0 0.0
        %928 = vmatpush1.msra.mxu0 %v760
        %929 = vmatprep.subr.mxu0 0.0
        %930 = vmatpush1.msra.mxu0 %v761
        %931 = vmatprep.subr.mxu0 0.0
        %932 = vmatpush1.msra.mxu0 %v762
        %933 = vmatprep.subr.mxu0 0.0
        %934 = vmatpush1.msra.mxu0 %v763
        %935 = vmatprep.subr.mxu0 0.0
        %936 = vmatpush1.msra.mxu0 %v764
        %937 = vmatprep.subr.mxu0 0.0
        %938 = vmatpush1.msra.mxu0 %v765
        %939 = vmatprep.subr.mxu0 0.0
        %940 = vmatpush1.msra.mxu0 %v766
        %941 = vmatprep.subr.mxu0 0.0
        %942 = vmatpush1.msra.mxu0 %v767
        %943 = vmatprep.subr.mxu0 0.0
        %944 = vmatpush1.msra.mxu0 %v768
        %945 = vmatprep.subr.mxu0 0.0
        %946 = vmatpush1.msra.mxu0 %v769
        %947 = vmatprep.subr.mxu0 0.0
        %948 = vmatpush1.msra.mxu0 %v770
        %949 = vmatprep.subr.mxu0 0.0
        %950 = vmatpush1.msra.mxu0 %v771
        %951 = vmatprep.subr.mxu0 0.0
        %952 = vmatpush1.msra.mxu0 %v772
        %953 = vmatprep.subr.mxu0 0.0
        %954 = vmatpush1.msra.mxu0 %v773
        %955 = vmatprep.subr.mxu0 0.0
        %956 = vmatpush1.msra.mxu0 %v774
        %957 = vmatprep.subr.mxu0 0.0
        %958 = vmatpush1.msra.mxu0 %v775
        %959 = vmatprep.subr.mxu0 0.0
        %960 = vmatpush1.msra.mxu0 %v776
        %961 = vmatprep.subr.mxu0 0.0
        %962 = vmatpush1.msra.mxu0 %v777
        %963 = vmatprep.subr.mxu0 0.0
        %964 = vmatpush1.msra.mxu0 %v778
        %965 = vmatprep.mubr.f32.mxu0 %v688
        %966 = vmatmul.mubr.f32.gmra.mrb[0].mxu0 %v687
        %v967 = vpop.f32.mrb[0].mxu0
        %v968 = vadd.f32 %v873, %v967
        %v969 = vpop.f32.mrb[0].mxu0
        %970 = vmatprep.mubr.f32.mxu0 %v693
        %971 = vmatmul.mubr.f32.gmra.mrb[0].mxu0 %v692
        %v972 = vpop.f32.mrb[0].mxu0
        %v973 = vadd.f32 %v878, %v972
        %v974 = vpop.f32.mrb[0].mxu0
        %975 = vmatprep.mubr.f32.mxu0 %v698
        %976 = vmatmul.mubr.f32.gmra.mrb[0].mxu0 %v697
        %v977 = vpop.f32.mrb[0].mxu0
        %v978 = vadd.f32 %v883, %v977
        %v979 = vpop.f32.mrb[0].mxu0
        %980 = vmatprep.mubr.f32.mxu0 %v703
        %981 = vmatmul.mubr.f32.gmra.mrb[0].mxu0 %v702
        %v982 = vpop.f32.mrb[0].mxu0
        %v983 = vadd.f32 %v888, %v982
        %v984 = vpop.f32.mrb[0].mxu0
        %985 = vmatprep.mubr.f32.mxu0 %v708
        %986 = vmatmul.mubr.f32.gmra.mrb[0].mxu0 %v707
        %v987 = vpop.f32.mrb[0].mxu0
        %v988 = vadd.f32 %v893, %v987
        %v989 = vpop.f32.mrb[0].mxu0
        %990 = vmatprep.mubr.f32.mxu0 %v713
        %991 = vmatmul.mubr.f32.gmra.mrb[0].mxu0 %v712
        %v992 = vpop.f32.mrb[0].mxu0
        %v993 = vadd.f32 %v898, %v992
        %v994 = vpop.f32.mrb[0].mxu0
        %995 = vdwg.mxu0
        %996 = vmatprep.subr.mxu0 0.0
        %997 = vmatpush1.msra.mxu0 %v779
        %998 = vmatprep.subr.mxu0 0.0
        %999 = vmatpush1.msra.mxu0 %v780
        %1000 = vmatprep.subr.mxu0 0.0
        %1001 = vmatpush1.msra.mxu0 %v781
        %1002 = vmatprep.subr.mxu0 0.0
        %1003 = vmatpush1.msra.mxu0 %v782
        %1004 = vmatprep.subr.mxu0 0.0
        %1005 = vmatpush1.msra.mxu0 %v783
        %1006 = vmatprep.subr.mxu0 0.0
        %1007 = vmatpush1.msra.mxu0 %v784
        %1008 = vmatprep.subr.mxu0 0.0
        %1009 = vmatpush1.msra.mxu0 %v785
        %1010 = vmatprep.subr.mxu0 0.0
        %1011 = vmatpush1.msra.mxu0 %v786
        %1012 = vmatprep.subr.mxu0 0.0
        %1013 = vmatpush1.msra.mxu0 0.0
        %1014 = vmatprep.subr.mxu0 0.0
        %1015 = vmatpush1.msra.mxu0 0.0
        %1016 = vmatprep.subr.mxu0 0.0
        %1017 = vmatpush1.msra.mxu0 0.0
        %1018 = vmatprep.subr.mxu0 0.0
        %1019 = vmatpush1.msra.mxu0 0.0
        %1020 = vmatprep.subr.mxu0 0.0
        %1021 = vmatpush1.msra.mxu0 0.0
        %1022 = vmatprep.subr.mxu0 0.0
        %1023 = vmatpush1.msra.mxu0 0.0
        %1024 = vmatprep.subr.mxu0 0.0
        %1025 = vmatpush1.msra.mxu0 0.0
        %1026 = vmatprep.subr.mxu0 0.0
        %1027 = vmatpush1.msra.mxu0 0.0
        %1028 = vmatprep.subr.mxu0 0.0
        %1029 = vmatpush1.msra.mxu0 0.0
        %1030 = vmatprep.subr.mxu0 0.0
        %1031 = vmatpush1.msra.mxu0 0.0
        %1032 = vmatprep.subr.mxu0 0.0
        %1033 = vmatpush1.msra.mxu0 0.0
        %1034 = vmatprep.subr.mxu0 0.0
        %1035 = vmatpush1.msra.mxu0 0.0
        %1036 = vmatprep.subr.mxu0 0.0
        %1037 = vmatpush1.msra.mxu0 0.0
        %1038 = vmatprep.subr.mxu0 0.0
        %1039 = vmatpush1.msra.mxu0 0.0
        %1040 = vmatprep.subr.mxu0 0.0
        %1041 = vmatpush1.msra.mxu0 0.0
        %1042 = vmatprep.subr.mxu0 0.0
        %1043 = vmatpush1.msra.mxu0 0.0
        %1044 = vmatprep.subr.mxu0 0.0
        %1045 = vmatpush1.msra.mxu0 0.0
        %1046 = vmatprep.subr.mxu0 0.0
        %1047 = vmatpush1.msra.mxu0 0.0
        %1048 = vmatprep.subr.mxu0 0.0
        %1049 = vmatpush1.msra.mxu0 0.0
        %1050 = vmatprep.subr.mxu0 0.0
        %1051 = vmatpush1.msra.mxu0 0.0
        %1052 = vmatprep.subr.mxu0 0.0
        %1053 = vmatpush1.msra.mxu0 0.0
        %1054 = vmatprep.subr.mxu0 0.0
        %1055 = vmatpush1.msra.mxu0 0.0
        %1056 = vmatprep.subr.mxu0 0.0
        %1057 = vmatpush1.msra.mxu0 0.0
        %1058 = vmatprep.subr.mxu0 0.0
        %1059 = vmatpush1.msra.mxu0 0.0
        %1060 = vmatprep.mubr.f32.mxu0 0.0
        %1061 = vmatmul.mubr.f32.gmra.mrb[0].mxu0 %v789
        %v1062 = vpop.f32.mrb[0].mxu0
        %v1063 = vadd.f32 %v968, %v1062
        %v1064 = vpop.f32.mrb[0].mxu0
        %1065 = vmatprep.mubr.f32.mxu0 0.0
        %1066 = vmatmul.mubr.f32.gmra.mrb[0].mxu0 %v792
        %v1067 = vpop.f32.mrb[0].mxu0
        %v1068 = vadd.f32 %v973, %v1067
        %v1069 = vpop.f32.mrb[0].mxu0
        %1070 = vmatprep.mubr.f32.mxu0 0.0
        %1071 = vmatmul.mubr.f32.gmra.mrb[0].mxu0 %v795
        %v1072 = vpop.f32.mrb[0].mxu0
        %v1073 = vadd.f32 %v978, %v1072
        %v1074 = vpop.f32.mrb[0].mxu0
        %1075 = vmatprep.mubr.f32.mxu0 0.0
        %1076 = vmatmul.mubr.f32.gmra.mrb[0].mxu0 %v798
        %v1077 = vpop.f32.mrb[0].mxu0
        %v1078 = vadd.f32 %v983, %v1077
        %v1079 = vpop.f32.mrb[0].mxu0
        %1080 = vmatprep.mubr.f32.mxu0 0.0
        %1081 = vmatmul.mubr.f32.gmra.mrb[0].mxu0 %v801
        %v1082 = vpop.f32.mrb[0].mxu0
        %v1083 = vadd.f32 %v988, %v1082
        %v1084 = vpop.f32.mrb[0].mxu0
        %1085 = vmatprep.mubr.f32.mxu0 0.0
        %1086 = vmatmul.mubr.f32.gmra.mrb[0].mxu0 %v804
        %v1087 = vpop.f32.mrb[0].mxu0
        %v1088 = vadd.f32 %v993, %v1087
        %v1089 = vpop.f32.mrb[0].mxu0
        %1090 = vdwg.mxu0
        %v1091 = vld [vmem:[#allocation7] sm:$0xff]
        %v1092 = vld [vmem:[#allocation7 + $0x8] sm:$0xff]
        %v1093 = vld [vmem:[#allocation7 + $0x10] sm:$0xff]
        %v1094 = vld [vmem:[#allocation7 + $0x18] sm:$0xff]
        %v1095 = vld [vmem:[#allocation8] sm:$0x1]
        %v1097 = vlaneseq
        %v1098 = vshrl.u32 %v1097, 7
        %v1099 = vsub.s32 0, %v1098
        %v1100 = vrot.slane %v1095, %v1099
        %vm1102 = vcmask 261120
        %v1104 = vsel %vm1102, %v1063, 0
        %v1107 = vsel %vm1102, %v1068, 0
        %v1110 = vsel %vm1102, %v1073, 0
        %v1113 = vsel %vm1102, %v1078, 0
        %v1116 = vsel %vm1102, %v1083, 0
        %v1119 = vsel %vm1102, %v1088, 0
        %1121 = vmatprep.subr.mxu0 0.0
        %1122 = vmatpush1.msra.mxu0 %v1091
        %1123 = vmatprep.subr.mxu0 0.0
        %1124 = vmatpush1.msra.mxu0 %v1092
        %1125 = vmatprep.subr.mxu0 0.0
        %1126 = vmatpush1.msra.mxu0 %v1093
        %1127 = vmatprep.subr.mxu0 0.0
        %1128 = vmatpush1.msra.mxu0 %v1094
        %1129 = vmatprep.subr.mxu0 0.0
        %1130 = vmatpush1.msra.mxu0 0.0
        %1131 = vmatprep.subr.mxu0 0.0
        %1132 = vmatpush1.msra.mxu0 0.0
        %1133 = vmatprep.subr.mxu0 0.0
        %1134 = vmatpush1.msra.mxu0 0.0
        %1135 = vmatprep.subr.mxu0 0.0
        %1136 = vmatpush1.msra.mxu0 0.0
        %1137 = vmatprep.subr.mxu0 0.0
        %1138 = vmatpush1.msra.mxu0 0.0
        %1139 = vmatprep.subr.mxu0 0.0
        %1140 = vmatpush1.msra.mxu0 0.0
        %1141 = vmatprep.subr.mxu0 0.0
        %1142 = vmatpush1.msra.mxu0 0.0
        %1143 = vmatprep.subr.mxu0 0.0
        %1144 = vmatpush1.msra.mxu0 0.0
        %1145 = vmatprep.subr.mxu0 0.0
        %1146 = vmatpush1.msra.mxu0 0.0
        %1147 = vmatprep.subr.mxu0 0.0
        %1148 = vmatpush1.msra.mxu0 0.0
        %1149 = vmatprep.subr.mxu0 0.0
        %1150 = vmatpush1.msra.mxu0 0.0
        %1151 = vmatprep.subr.mxu0 0.0
        %1152 = vmatpush1.msra.mxu0 0.0
        %1153 = vmatprep.subr.mxu0 0.0
        %1154 = vmatpush1.msra.mxu0 0.0
        %1155 = vmatprep.subr.mxu0 0.0
        %1156 = vmatpush1.msra.mxu0 0.0
        %1157 = vmatprep.subr.mxu0 0.0
        %1158 = vmatpush1.msra.mxu0 0.0
        %1159 = vmatprep.subr.mxu0 0.0
        %1160 = vmatpush1.msra.mxu0 0.0
        %1161 = vmatprep.subr.mxu0 0.0
        %1162 = vmatpush1.msra.mxu0 0.0
        %1163 = vmatprep.subr.mxu0 0.0
        %1164 = vmatpush1.msra.mxu0 0.0
        %1165 = vmatprep.subr.mxu0 0.0
        %1166 = vmatpush1.msra.mxu0 0.0
        %1167 = vmatprep.subr.mxu0 0.0
        %1168 = vmatpush1.msra.mxu0 0.0
        %1169 = vmatprep.subr.mxu0 0.0
        %1170 = vmatpush1.msra.mxu0 0.0
        %1171 = vmatprep.subr.mxu0 0.0
        %1172 = vmatpush1.msra.mxu0 0.0
        %1173 = vmatprep.subr.mxu0 0.0
        %1174 = vmatpush1.msra.mxu0 0.0
        %1175 = vmatprep.subr.mxu0 0.0
        %1176 = vmatpush1.msra.mxu0 0.0
        %1177 = vmatprep.subr.mxu0 0.0
        %1178 = vmatpush1.msra.mxu0 0.0
        %1179 = vmatprep.subr.mxu0 0.0
        %1180 = vmatpush1.msra.mxu0 0.0
        %1181 = vmatprep.subr.mxu0 0.0
        %1182 = vmatpush1.msra.mxu0 0.0
        %1183 = vmatprep.subr.mxu0 0.0
        %1184 = vmatpush1.msra.mxu0 0.0
        %1185 = vmatprep.mubr.f32.mxu0 0.0
        %1186 = vmatmul.mubr.f32.gmra.mrb[0].mxu0 %v1104
        %v1187 = vpop.f32.mrb[0].mxu0
        %v1188 = vadd.f32 %v1100, %v1187
        %v1189 = vpop.f32.mrb[0].mxu0
        %1190 = vmatprep.mubr.f32.mxu0 0.0
        %1191 = vmatmul.mubr.f32.gmra.mrb[0].mxu0 %v1107
        %v1192 = vpop.f32.mrb[0].mxu0
        %v1193 = vadd.f32 %v1100, %v1192
        %v1194 = vpop.f32.mrb[0].mxu0
        %1195 = vmatprep.mubr.f32.mxu0 0.0
        %1196 = vmatmul.mubr.f32.gmra.mrb[0].mxu0 %v1110
        %v1197 = vpop.f32.mrb[0].mxu0
        %v1198 = vadd.f32 %v1100, %v1197
        %v1199 = vpop.f32.mrb[0].mxu0
        %1200 = vmatprep.mubr.f32.mxu0 0.0
        %1201 = vmatmul.mubr.f32.gmra.mrb[0].mxu0 %v1113
        %v1202 = vpop.f32.mrb[0].mxu0
        %v1203 = vadd.f32 %v1100, %v1202
        %v1204 = vpop.f32.mrb[0].mxu0
        %1205 = vmatprep.mubr.f32.mxu0 0.0
        %1206 = vmatmul.mubr.f32.gmra.mrb[0].mxu0 %v1116
        %v1207 = vpop.f32.mrb[0].mxu0
        %v1208 = vadd.f32 %v1100, %v1207
        %v1209 = vpop.f32.mrb[0].mxu0
        %1210 = vmatprep.mubr.f32.mxu0 0.0
        %1211 = vmatmul.mubr.f32.gmra.mrb[0].mxu0 %v1119
        %v1212 = vpop.f32.mrb[0].mxu0
        %v1213 = vadd.f32 %v1100, %v1212
        %v1214 = vpop.f32.mrb[0].mxu0
        %1215 = vdwg.mxu0
        %v1216 = vld [vmem:[#allocation10] sm:$0xff]
        %v1217 = vld [vmem:[#allocation10 + $0x8] sm:$0xff]
        %v1218 = vld [vmem:[#allocation10 + $0x10] sm:$0xff]
        %v1219 = vld [vmem:[#allocation10 + $0x18] sm:$0xff]
        %v1220 = vld [vmem:[#allocation10 + $0x20] sm:$0xff]
        %v1221 = vld [vmem:[#allocation10 + $0x28] sm:$0xff]
        %v1222 = vld [vmem:[#allocation10 + $0x30] sm:$0xff]
        %v1223 = vld [vmem:[#allocation10 + $0x38] sm:$0xff]
        %v1224 = vld [vmem:[#allocation10 + $0x40] sm:$0xff]
        %v1225 = vld [vmem:[#allocation10 + $0x48] sm:$0xff]
        %v1226 = vld [vmem:[#allocation10 + $0x50] sm:$0xff]
        %v1227 = vld [vmem:[#allocation10 + $0x58] sm:$0xff]
        %v1228 = vld [vmem:[#allocation10 + $0x60] sm:$0xff]
        %v1229 = vld [vmem:[#allocation10 + $0x68] sm:$0xff]
        %v1230 = vld [vmem:[#allocation10 + $0x70] sm:$0xff]
        %v1231 = vld [vmem:[#allocation10 + $0x78] sm:$0xff]
        %v1232 = vld [vmem:[#allocation10 + $0x80] sm:$0xff]
        %v1233 = vld [vmem:[#allocation10 + $0x88] sm:$0xff]
        %v1234 = vld [vmem:[#allocation10 + $0x90] sm:$0xff]
        %v1235 = vld [vmem:[#allocation10 + $0x98] sm:$0xff]
        %v1236 = vld [vmem:[#allocation10 + $0xa0] sm:$0xff]
        %v1237 = vld [vmem:[#allocation10 + $0xa8] sm:$0xff]
        %v1238 = vld [vmem:[#allocation10 + $0xb0] sm:$0xff]
        %v1239 = vld [vmem:[#allocation10 + $0xb8] sm:$0xff]
        %v1240 = vld [vmem:[#allocation10 + $0xc0] sm:$0xff]
        %v1241 = vld [vmem:[#allocation10 + $0xc8] sm:$0xff]
        %v1242 = vld [vmem:[#allocation10 + $0xd0] sm:$0xff]
        %v1243 = vld [vmem:[#allocation10 + $0xd8] sm:$0xff]
        %v1244 = vld [vmem:[#allocation10 + $0xe0] sm:$0xff]
        %v1245 = vld [vmem:[#allocation10 + $0xe8] sm:$0xff]
        %v1246 = vld [vmem:[#allocation10 + $0xf0] sm:$0xff]
        %v1247 = vld [vmem:[#allocation10 + $0xf8] sm:$0xff]
        %v1248 = vld [vmem:[#allocation10 + $0x100] sm:$0xff]
        %v1249 = vld [vmem:[#allocation10 + $0x108] sm:$0xff]
        %v1250 = vld [vmem:[#allocation10 + $0x110] sm:$0xff]
        %v1251 = vld [vmem:[#allocation10 + $0x118] sm:$0xff]
        %v1252 = vld [vmem:[#allocation10 + $0x120] sm:$0xff]
        %v1253 = vld [vmem:[#allocation10 + $0x128] sm:$0xff]
        %v1254 = vld [vmem:[#allocation10 + $0x130] sm:$0xff]
        %v1255 = vld [vmem:[#allocation10 + $0x138] sm:$0xff]
        %v1256 = vld [vmem:[#allocation10 + $0x140] sm:$0xff]
        %v1257 = vld [vmem:[#allocation10 + $0x148] sm:$0xff]
        %v1258 = vld [vmem:[#allocation10 + $0x150] sm:$0xff]
        %v1259 = vld [vmem:[#allocation10 + $0x158] sm:$0xff]
        %v1260 = vld [vmem:[#allocation10 + $0x160] sm:$0xff]
        %v1261 = vld [vmem:[#allocation10 + $0x168] sm:$0xff]
        %v1262 = vld [vmem:[#allocation10 + $0x170] sm:$0xff]
        %v1263 = vld [vmem:[#allocation10 + $0x178] sm:$0xff]
        %v1264 = vld [vmem:[#allocation10 + $0x180] sm:$0xff]
        %v1265 = vld [vmem:[#allocation10 + $0x188] sm:$0xff]
        %v1266 = vld [vmem:[#allocation10 + $0x190] sm:$0xff]
        %v1267 = vld [vmem:[#allocation10 + $0x198] sm:$0xff]
        %v1268 = vld [vmem:[#allocation10 + $0x1a0] sm:$0xff]
        %v1269 = vld [vmem:[#allocation10 + $0x1a8] sm:$0xff]
        %v1270 = vld [vmem:[#allocation10 + $0x1b0] sm:$0xff]
        %v1271 = vld [vmem:[#allocation10 + $0x1b8] sm:$0xff]
        %v1272 = vld [vmem:[#allocation10 + $0x1c0] sm:$0xff]
        %v1273 = vld [vmem:[#allocation10 + $0x1c8] sm:$0xff]
        %v1274 = vld [vmem:[#allocation10 + $0x1d0] sm:$0xff]
        %v1275 = vld [vmem:[#allocation10 + $0x1d8] sm:$0xff]
        %v1276 = vld [vmem:[#allocation10 + $0x1e0] sm:$0xff]
        %v1277 = vld [vmem:[#allocation10 + $0x1e8] sm:$0xff]
        %v1278 = vld [vmem:[#allocation10 + $0x1f0] sm:$0xff]
        %v1279 = vld [vmem:[#allocation10 + $0x1f8] sm:$0xff]
        %v1280 = vld [vmem:[#allocation10 + $0x200] sm:$0xff]
        %v1281 = vld [vmem:[#allocation10 + $0x208] sm:$0xff]
        %v1282 = vld [vmem:[#allocation10 + $0x210] sm:$0xff]
        %v1283 = vld [vmem:[#allocation10 + $0x218] sm:$0xff]
        %v1284 = vld [vmem:[#allocation10 + $0x220] sm:$0xff]
        %v1285 = vld [vmem:[#allocation10 + $0x228] sm:$0xff]
        %v1286 = vld [vmem:[#allocation10 + $0x230] sm:$0xff]
        %v1287 = vld [vmem:[#allocation10 + $0x238] sm:$0xff]
        %v1288 = vld [vmem:[#allocation11] sm:$0x1]
        %v1290 = vlaneseq
        %v1291 = vshrl.u32 %v1290, 7
        %v1292 = vsub.s32 0, %v1291
        %v1293 = vrot.slane %v1288, %v1292
        %v1295 = vcombine.high %v486, %v486
        %v1296 = vcombine.high %v487, %v487
        %v1299 = vsel %vm787, %v488, 0
        %1301 = vmatprep.subr.mxu0 0.0
        %1302 = vmatpush1.msra.mxu0 %v1216
        %1303 = vmatprep.subr.mxu0 0.0
        %1304 = vmatpush1.msra.mxu0 %v1217
        %1305 = vmatprep.subr.mxu0 0.0
        %1306 = vmatpush1.msra.mxu0 %v1218
        %1307 = vmatprep.subr.mxu0 0.0
        %1308 = vmatpush1.msra.mxu0 %v1219
        %1309 = vmatprep.subr.mxu0 0.0
        %1310 = vmatpush1.msra.mxu0 %v1220
        %1311 = vmatprep.subr.mxu0 0.0
        %1312 = vmatpush1.msra.mxu0 %v1221
        %1313 = vmatprep.subr.mxu0 0.0
        %1314 = vmatpush1.msra.mxu0 %v1222
        %1315 = vmatprep.subr.mxu0 0.0
        %1316 = vmatpush1.msra.mxu0 %v1223
        %1317 = vmatprep.subr.mxu0 0.0
        %1318 = vmatpush1.msra.mxu0 %v1224
        %1319 = vmatprep.subr.mxu0 0.0
        %1320 = vmatpush1.msra.mxu0 %v1225
        %1321 = vmatprep.subr.mxu0 0.0
        %1322 = vmatpush1.msra.mxu0 %v1226
        %1323 = vmatprep.subr.mxu0 0.0
        %1324 = vmatpush1.msra.mxu0 %v1227
        %1325 = vmatprep.subr.mxu0 0.0
        %1326 = vmatpush1.msra.mxu0 %v1228
        %1327 = vmatprep.subr.mxu0 0.0
        %1328 = vmatpush1.msra.mxu0 %v1229
        %1329 = vmatprep.subr.mxu0 0.0
        %1330 = vmatpush1.msra.mxu0 %v1230
        %1331 = vmatprep.subr.mxu0 0.0
        %1332 = vmatpush1.msra.mxu0 %v1231
        %1333 = vmatprep.subr.mxu0 0.0
        %1334 = vmatpush1.msra.mxu0 %v1232
        %1335 = vmatprep.subr.mxu0 0.0
        %1336 = vmatpush1.msra.mxu0 %v1233
        %1337 = vmatprep.subr.mxu0 0.0
        %1338 = vmatpush1.msra.mxu0 %v1234
        %1339 = vmatprep.subr.mxu0 0.0
        %1340 = vmatpush1.msra.mxu0 %v1235
        %1341 = vmatprep.subr.mxu0 0.0
        %1342 = vmatpush1.msra.mxu0 %v1236
        %1343 = vmatprep.subr.mxu0 0.0
        %1344 = vmatpush1.msra.mxu0 %v1237
        %1345 = vmatprep.subr.mxu0 0.0
        %1346 = vmatpush1.msra.mxu0 %v1238
        %1347 = vmatprep.subr.mxu0 0.0
        %1348 = vmatpush1.msra.mxu0 %v1239
        %1349 = vmatprep.subr.mxu0 0.0
        %1350 = vmatpush1.msra.mxu0 %v1240
        %1351 = vmatprep.subr.mxu0 0.0
        %1352 = vmatpush1.msra.mxu0 %v1241
        %1353 = vmatprep.subr.mxu0 0.0
        %1354 = vmatpush1.msra.mxu0 %v1242
        %1355 = vmatprep.subr.mxu0 0.0
        %1356 = vmatpush1.msra.mxu0 %v1243
        %1357 = vmatprep.subr.mxu0 0.0
        %1358 = vmatpush1.msra.mxu0 %v1244
        %1359 = vmatprep.subr.mxu0 0.0
        %1360 = vmatpush1.msra.mxu0 %v1245
        %1361 = vmatprep.subr.mxu0 0.0
        %1362 = vmatpush1.msra.mxu0 %v1246
        %1363 = vmatprep.subr.mxu0 0.0
        %1364 = vmatpush1.msra.mxu0 %v1247
        %1365 = vmatprep.mubr.f32.mxu0 %v1295
        %1366 = vmatmul.mubr.f32.gmra.mrb[0].mxu0 %v486
        %v1367 = vpop.f32.mrb[0].mxu0
        %v1368 = vadd.f32 %v1293, %v1367
        %v1369 = vpop.f32.mrb[0].mxu0
        %1370 = vdwg.mxu0
        %1371 = vmatprep.subr.mxu0 0.0
        %1372 = vmatpush1.msra.mxu0 %v1248
        %1373 = vmatprep.subr.mxu0 0.0
        %1374 = vmatpush1.msra.mxu0 %v1249
        %1375 = vmatprep.subr.mxu0 0.0
        %1376 = vmatpush1.msra.mxu0 %v1250
        %1377 = vmatprep.subr.mxu0 0.0
        %1378 = vmatpush1.msra.mxu0 %v1251
        %1379 = vmatprep.subr.mxu0 0.0
        %1380 = vmatpush1.msra.mxu0 %v1252
        %1381 = vmatprep.subr.mxu0 0.0
        %1382 = vmatpush1.msra.mxu0 %v1253
        %1383 = vmatprep.subr.mxu0 0.0
        %1384 = vmatpush1.msra.mxu0 %v1254
        %1385 = vmatprep.subr.mxu0 0.0
        %1386 = vmatpush1.msra.mxu0 %v1255
        %1387 = vmatprep.subr.mxu0 0.0
        %1388 = vmatpush1.msra.mxu0 %v1256
        %1389 = vmatprep.subr.mxu0 0.0
        %1390 = vmatpush1.msra.mxu0 %v1257
        %1391 = vmatprep.subr.mxu0 0.0
        %1392 = vmatpush1.msra.mxu0 %v1258
        %1393 = vmatprep.subr.mxu0 0.0
        %1394 = vmatpush1.msra.mxu0 %v1259
        %1395 = vmatprep.subr.mxu0 0.0
        %1396 = vmatpush1.msra.mxu0 %v1260
        %1397 = vmatprep.subr.mxu0 0.0
        %1398 = vmatpush1.msra.mxu0 %v1261
        %1399 = vmatprep.subr.mxu0 0.0
        %1400 = vmatpush1.msra.mxu0 %v1262
        %1401 = vmatprep.subr.mxu0 0.0
        %1402 = vmatpush1.msra.mxu0 %v1263
        %1403 = vmatprep.subr.mxu0 0.0
        %1404 = vmatpush1.msra.mxu0 %v1264
        %1405 = vmatprep.subr.mxu0 0.0
        %1406 = vmatpush1.msra.mxu0 %v1265
        %1407 = vmatprep.subr.mxu0 0.0
        %1408 = vmatpush1.msra.mxu0 %v1266
        %1409 = vmatprep.subr.mxu0 0.0
        %1410 = vmatpush1.msra.mxu0 %v1267
        %1411 = vmatprep.subr.mxu0 0.0
        %1412 = vmatpush1.msra.mxu0 %v1268
        %1413 = vmatprep.subr.mxu0 0.0
        %1414 = vmatpush1.msra.mxu0 %v1269
        %1415 = vmatprep.subr.mxu0 0.0
        %1416 = vmatpush1.msra.mxu0 %v1270
        %1417 = vmatprep.subr.mxu0 0.0
        %1418 = vmatpush1.msra.mxu0 %v1271
        %1419 = vmatprep.subr.mxu0 0.0
        %1420 = vmatpush1.msra.mxu0 %v1272
        %1421 = vmatprep.subr.mxu0 0.0
        %1422 = vmatpush1.msra.mxu0 %v1273
        %1423 = vmatprep.subr.mxu0 0.0
        %1424 = vmatpush1.msra.mxu0 %v1274
        %1425 = vmatprep.subr.mxu0 0.0
        %1426 = vmatpush1.msra.mxu0 %v1275
        %1427 = vmatprep.subr.mxu0 0.0
        %1428 = vmatpush1.msra.mxu0 %v1276
        %1429 = vmatprep.subr.mxu0 0.0
        %1430 = vmatpush1.msra.mxu0 %v1277
        %1431 = vmatprep.subr.mxu0 0.0
        %1432 = vmatpush1.msra.mxu0 %v1278
        %1433 = vmatprep.subr.mxu0 0.0
        %1434 = vmatpush1.msra.mxu0 %v1279
        %1435 = vmatprep.mubr.f32.mxu0 %v1296
        %1436 = vmatmul.mubr.f32.gmra.mrb[0].mxu0 %v487
        %v1437 = vpop.f32.mrb[0].mxu0
        %v1438 = vadd.f32 %v1368, %v1437
        %v1439 = vpop.f32.mrb[0].mxu0
        %1440 = vdwg.mxu0
        %1441 = vmatprep.subr.mxu0 0.0
        %1442 = vmatpush1.msra.mxu0 %v1280
        %1443 = vmatprep.subr.mxu0 0.0
        %1444 = vmatpush1.msra.mxu0 %v1281
        %1445 = vmatprep.subr.mxu0 0.0
        %1446 = vmatpush1.msra.mxu0 %v1282
        %1447 = vmatprep.subr.mxu0 0.0
        %1448 = vmatpush1.msra.mxu0 %v1283
        %1449 = vmatprep.subr.mxu0 0.0
        %1450 = vmatpush1.msra.mxu0 %v1284
        %1451 = vmatprep.subr.mxu0 0.0
        %1452 = vmatpush1.msra.mxu0 %v1285
        %1453 = vmatprep.subr.mxu0 0.0
        %1454 = vmatpush1.msra.mxu0 %v1286
        %1455 = vmatprep.subr.mxu0 0.0
        %1456 = vmatpush1.msra.mxu0 %v1287
        %1457 = vmatprep.subr.mxu0 0.0
        %1458 = vmatpush1.msra.mxu0 0.0
        %1459 = vmatprep.subr.mxu0 0.0
        %1460 = vmatpush1.msra.mxu0 0.0
        %1461 = vmatprep.subr.mxu0 0.0
        %1462 = vmatpush1.msra.mxu0 0.0
        %1463 = vmatprep.subr.mxu0 0.0
        %1464 = vmatpush1.msra.mxu0 0.0
        %1465 = vmatprep.subr.mxu0 0.0
        %1466 = vmatpush1.msra.mxu0 0.0
        %1467 = vmatprep.subr.mxu0 0.0
        %1468 = vmatpush1.msra.mxu0 0.0
        %1469 = vmatprep.subr.mxu0 0.0
        %1470 = vmatpush1.msra.mxu0 0.0
        %1471 = vmatprep.subr.mxu0 0.0
        %1472 = vmatpush1.msra.mxu0 0.0
        %1473 = vmatprep.subr.mxu0 0.0
        %1474 = vmatpush1.msra.mxu0 0.0
        %1475 = vmatprep.subr.mxu0 0.0
        %1476 = vmatpush1.msra.mxu0 0.0
        %1477 = vmatprep.subr.mxu0 0.0
        %1478 = vmatpush1.msra.mxu0 0.0
        %1479 = vmatprep.subr.mxu0 0.0
        %1480 = vmatpush1.msra.mxu0 0.0
        %1481 = vmatprep.subr.mxu0 0.0
        %1482 = vmatpush1.msra.mxu0 0.0
        %1483 = vmatprep.subr.mxu0 0.0
        %1484 = vmatpush1.msra.mxu0 0.0
        %1485 = vmatprep.subr.mxu0 0.0
        %1486 = vmatpush1.msra.mxu0 0.0
        %1487 = vmatprep.subr.mxu0 0.0
        %1488 = vmatpush1.msra.mxu0 0.0
        %1489 = vmatprep.subr.mxu0 0.0
        %1490 = vmatpush1.msra.mxu0 0.0
        %1491 = vmatprep.subr.mxu0 0.0
        %1492 = vmatpush1.msra.mxu0 0.0
        %1493 = vmatprep.subr.mxu0 0.0
        %1494 = vmatpush1.msra.mxu0 0.0
        %1495 = vmatprep.subr.mxu0 0.0
        %1496 = vmatpush1.msra.mxu0 0.0
        %1497 = vmatprep.subr.mxu0 0.0
        %1498 = vmatpush1.msra.mxu0 0.0
        %1499 = vmatprep.subr.mxu0 0.0
        %1500 = vmatpush1.msra.mxu0 0.0
        %1501 = vmatprep.subr.mxu0 0.0
        %1502 = vmatpush1.msra.mxu0 0.0
        %1503 = vmatprep.subr.mxu0 0.0
        %1504 = vmatpush1.msra.mxu0 0.0
        %1505 = vmatprep.mubr.f32.mxu0 0.0
        %1506 = vmatmul.mubr.f32.gmra.mrb[0].mxu0 %v1299
        %v1507 = vpop.f32.mrb[0].mxu0
        %v1508 = vadd.f32 %v1438, %v1507
        %v1509 = vpop.f32.mrb[0].mxu0
        %1510 = vdwg.mxu0
        %1511 = vst [vmem:[%s436] sm:$0xff] %v1188
        %1512 = vst [vmem:[%s436 + $0x8] sm:$0xff] %v1193
        %1513 = vst [vmem:[%s436 + $0x10] sm:$0xff] %v1198
        %1514 = vst [vmem:[%s436 + $0x18] sm:$0xff] %v1203
        %1515 = vst [vmem:[%s436 + $0x20] sm:$0xff] %v1208
        %1516 = vst [vmem:[%s436 + $0x28] sm:$0xff] %v1213
        %1517 = vst [vmem:[%s443] sm:$0x7] %v1508
        %s1518 = sand.u32 %s211, 1
        %s1519 = scalar_lea.sflag [#allocation4], %s1518
        %s1520 = sand.u32 %s211, 1
        %s1521 = smul.addr %s1520, 48
        %s1522 = scalar_lea.vmem [#allocation13], %s1521
        %s1523 = sand.u32 %s239, 1
        %s1524 = scalar_lea.sflag [#allocation15], %s1523
        %s1525 = sand.u32 %s239, 1
        %s1526 = smul.addr %s1525, 4
        %s1527 = scalar_lea.vmem [#allocation14], %s1526
        // Predicated region
        $region69: #{tpu_custom_call.1} parent=43 // pred_check
          %p1528 = pneg %p221
        $region70: #{tpu_custom_call.1} parent=43 // pred_check_branch
          %1530 = sbr.rel (%p1528) target = $region72
        $region71: #{tpu_custom_call.1} parent=43 // pred_region
          %s1532 = ssub.s32 768, 768
          %1533 = vsyncadd %s1519, %s1532
          %s1534 = smul.addr %s38, 6
          %s1535 = sadd.s32 %s37, %s1534
          %s1536 = smul.addr %s1535, 128
          %s1537 = scalar_lea.hbm %s6, %s1536
          %s1538 = sshll.u32 %s1522, 4
          %s1539 = int_to_ptr.vmem [resolvable:$true] %s1538
          %1544 = dma.vmem_to_hbm [thread:$0]  %s1539, 768, %s1537, %s1519, 128, 128, 8
        $region72: #{tpu_custom_call.1} parent=43 // pred_fallthru
          _
        // Predicated region
        $region73: #{tpu_custom_call.1} parent=43 // pred_check
          %p1545 = pneg %p249
        $region74: #{tpu_custom_call.1} parent=43 // pred_check_branch
          %1547 = sbr.rel (%p1545) target = $region76
        $region75: #{tpu_custom_call.1} parent=43 // pred_region
          %s1549 = ssub.s32 64, 64
          %1550 = vsyncadd %s1524, %s1549
          %s1551 = sadd.s32 %s37, %s38
          %s1552 = smul.addr %s1551, 64
          %s1553 = scalar_lea.hbm %s7, %s1552
          %s1555 = sshll.u32 %s1527, 4
          %s1556 = int_to_ptr.vmem [resolvable:$true] %s1555
          %1558 = dma.vmem_to_hbm [thread:$0]  %s1556, 64, %s1553, %s1524
        $region76: #{tpu_custom_call.1} parent=43 // pred_fallthru
          _
      $region44: #{tpu_custom_call.1} parent=5 // pred_fallthru
        _
      %p1559 = scmp.le.s32.totalorder 2, %s28
      // Predicated region
      $region77: #{tpu_custom_call.1} parent=5 // pred_check
        %p1560 = pneg %p1559
      $region78: #{tpu_custom_call.1} parent=5 // pred_check_branch
        %1562 = sbr.rel (%p1560) target = $region80
      $region79: #{tpu_custom_call.1} parent=5 // pred_region
        %s1563 = ssub.s32 %s28, 2
        // Predicated region
        $region81: #{tpu_custom_call.1} parent=79 // pred_check
          %p1564 = pneg %p227
        $region82: #{tpu_custom_call.1} parent=79 // pred_check_branch
          %1566 = sbr.rel (%p1564) target = $region84
        $region83: #{tpu_custom_call.1} parent=79 // pred_region
          %s1567 = sand.u32 %s212, 1
          %s1568 = scalar_lea.sflag [#allocation4], %s1567
          %s1569 = sand.u32 %s212, 1
          %s1570 = smul.addr %s1569, 48
          %s1571 = scalar_lea.vmem [#allocation13], %s1570
          %1572 = dma.done %s1568, 768
        $region84: #{tpu_custom_call.1} parent=79 // pred_fallthru
          _
        // Predicated region
        $region85: #{tpu_custom_call.1} parent=79 // pred_check
          %p1573 = pneg %p255
        $region86: #{tpu_custom_call.1} parent=79 // pred_check_branch
          %1575 = sbr.rel (%p1573) target = $region88
        $region87: #{tpu_custom_call.1} parent=79 // pred_region
          %s1576 = sand.u32 %s240, 1
          %s1577 = scalar_lea.sflag [#allocation15], %s1576
          %s1578 = sand.u32 %s240, 1
          %s1579 = smul.addr %s1578, 4
          %s1580 = scalar_lea.vmem [#allocation14], %s1579
          %1581 = dma.done %s1577, 64
        $region88: #{tpu_custom_call.1} parent=79 // pred_fallthru
          _
      $region80: #{tpu_custom_call.1} parent=5 // pred_fallthru
        _
    $region6: #{tpu_custom_call.1} parent=1 // loop_footer
      %s32 = sadd.s32 1, %s28
    $region7: #{tpu_custom_call.1} parent=1 // loop_footer_branch
      %27 = sbr.rel target = $region3
    $region8: #{tpu_custom_call.1} parent=1 // loop_exit
      _
    %1582 = vsyncpa [#allocation3], 1
    %s1583 = scalar_lea.sflag [#allocation3], 1
    %1584 = vsyncpa %s1583, 1
    %1585 = vsyncpa [#allocation6], 1
    %s1586 = scalar_lea.sflag [#allocation6], 1
    %1587 = vsyncpa %s1586, 1
    %1588 = vsyncpa [#allocation9], 1
    %1589 = vsyncpa [#allocation12], 1
    %1590 = vsyncpa [#allocation4], 1
    %s1591 = scalar_lea.sflag [#allocation4], 1
    %1592 = vsyncpa %s1591, 1
    %1593 = vsyncpa [#allocation15], 1
    %s1594 = scalar_lea.sflag [#allocation15], 1
    %1595 = vsyncpa %s1594, 1

</llo_original>
